<compile_context>
chip_gen: v7x
topology: tpu7x:2x2x1
jax: 0.10.0
libtpu: 0.0.40
codegen_flags: <defaults>
</compile_context>

<pallas_src>
import functools

import jax
import jax.numpy as jnp
from jax import lax
from jax.experimental import pallas as pl
from jax.experimental.pallas import tpu as pltpu

K = 4       # ConvTranspose2d kernel size
S = 2       # stride
P = 1       # padding
EPS = 1e-5  # InstanceNorm2d default eps


def _unet_up_kernel(x_ref, w_ref, o_ref, xp_ref, win_ref, acc_ref,
                    *, cin, cout, h, w, chunk, n_chunks):
    """One batch item per grid step.

    x_ref  : (Cin, H, W)            input block (auto-pipelined by BlockSpec)
    w_ref  : (4, Cout, 4*Cin)       fused per-phase tap weights (compute dtype)
    o_ref  : (Cout, 4*H*W)          phase-major output (cols [p*HW:(p+1)*HW] = phase p)
    xp_ref : VMEM (Cin, H+2, W+2)   halo-padded input (x dtype)
    win_ref: VMEM (9*Cin, HW)       9 shifted windows (compute dtype), built once
    acc_ref: VMEM (Cout, 4*HW)      f32 raw conv results for all 4 phases
    """
    hw = h * w
    cdt = win_ref.dtype
    zdt = xp_ref.dtype

    # ---- halo: zero ONLY the 1-pixel border; interior is fully overwritten below.
    # Done every step (not program_id-gated): with megacore each core owns its scratch.
    xp_ref[:, 0:1, :] = jnp.zeros((cin, 1, w + 2), zdt)
    xp_ref[:, h + 1:h + 2, :] = jnp.zeros((cin, 1, w + 2), zdt)
    xp_ref[:, :, 0:1] = jnp.zeros((cin, h + 2, 1), zdt)
    xp_ref[:, :, w + 1:w + 2] = jnp.zeros((cin, h + 2, 1), zdt)
    xp_ref[:, 1:h + 1, 1:w + 1] = x_ref[...].astype(zdt)
    # TODO(synk): DMA x straight from HBM (memory_space=pl.ANY + make_async_copy)
    #             into this interior to drop the VMEM offset store; kept on BlockSpec
    #             so x stays prefetched across grid steps and the DMA destination
    #             stays trivially aligned.

    # ---- 9 distinct shifted windows, built once (was 16 slice+reshape copies). ----
    for r in range(3):
        for c in range(3):
            idx = r * 3 + c
            win_ref[idx * cin:(idx + 1) * cin, :] = (
                xp_ref[:, r:r + h, c:c + w].reshape(cin, hw).astype(cdt))

    # ---- 4 output-parity phases.  Phase (a, b) uses windows (a+dh, b+dw),
    # dh,dw in {0,1}; rows [(3a+b)*cin : +2cin] and [(3(a+1)+b)*cin : +2cin] of
    # win_ref are contiguous, so each phase is exactly 2 MXU matmuls with NO column
    # assembly.  InstanceNorm sum / sum-of-squares accumulate while results are hot.
    s1 = jnp.zeros((cout, 1), jnp.float32)
    s2 = jnp.zeros((cout, 1), jnp.float32)
    for a in (0, 1):
        for b in (0, 1):
            p = 2 * a + b
            wp = w_ref[p]                                   # (Cout, 4*Cin)
            top = (a * 3 + b) * cin
            bot = ((a + 1) * 3 + b) * cin
            res = jnp.dot(wp[:, :2 * cin], win_ref[top:top + 2 * cin, :],
                          preferred_element_type=jnp.float32)
            res = res + jnp.dot(wp[:, 2 * cin:], win_ref[bot:bot + 2 * cin, :],
                                preferred_element_type=jnp.float32)
            acc_ref[:, p * hw:(p + 1) * hw] = res
            s1 = s1 + jnp.sum(res, axis=1, keepdims=True)
            s2 = s2 + jnp.sum(res * res, axis=1, keepdims=True)

    # ---- InstanceNorm2d(affine=False): per-(n, c) mean / biased var over ALL 4*HW
    # output pixels.  One-pass E[x^2]-mean^2 kept entirely in f32, clamped >= 0.
    inv_n = 1.0 / float(4 * hw)
    mean = s1 * inv_n
    var = jnp.maximum(s2 * inv_n - mean * mean, 0.0)
    scale = lax.rsqrt(var + EPS)

    # ---- Chunked, lane-aligned normalize + ReLU + store.  Static slices (chunk is
    # a multiple of 128 whenever 4*HW is), so every store is a lane-dense vst and
    # each chunk's live range ends at its store.
    for ci in range(n_chunks):
        lo = ci * chunk
        blk = acc_ref[:, lo:lo + chunk]
        o_ref[:, lo:lo + chunk] = (
            jnp.maximum((blk - mean) * scale, 0.0).astype(o_ref.dtype))


def _phase_weights(weight):
    """(Cin, Cout, 4, 4) PyTorch ConvTranspose2d weight -> (4, Cout, 4*Cin) fused taps.

    y[n, co, 2i+a, 2j+b] = sum_{ci, dh, dw} xpad[ci, i+a+dh, j+b+dw]
                                            * weight[ci, co, 3-a-2*dh, 3-b-2*dw]
    where xpad is x zero-padded by 1 pixel on each spatial side.  Tap order per
    phase is (dh, dw) = (0,0), (0,1), (1,0), (1,1), matching the window-row order
    used by the kernel's two contiguous-slice matmuls.
    """
    phases = []
    for a in (0, 1):
        for b in (0, 1):
            taps = []
            for dh in (0, 1):
                for dw in (0, 1):
                    taps.append(weight[:, :, 3 - a - 2 * dh, 3 - b - 2 * dw].T)  # (Cout, Cin)
            phases.append(jnp.concatenate(taps, axis=1))                          # (Cout, 4*Cin)
    return jnp.stack(phases, axis=0)                                              # (4, Cout, 4*Cin)


def _epilogue_chunks(total):
    """Largest lane-aligned chunk (<= 2048) dividing `total`; fallback: one chunk."""
    for cand in (2048, 1024, 512, 256, 128):
        if total % cand == 0:
            return cand, total // cand
    return total, 1


def unet_up_forward(x, skip_input, weight, *, compute_dtype=jnp.bfloat16):
    """x: (N, Cin, H, W); skip_input: (N, Cs, 2H, 2W);
    weight: (Cin, Cout, 4, 4) -- PyTorch ConvTranspose2d weight layout."""
    n, cin, h, w = x.shape
    cout = weight.shape[1]
    hw = h * w
    total = 4 * hw

    w_phase = _phase_weights(weight).astype(compute_dtype)
    chunk, n_chunks = _epilogue_chunks(total)

    # VMEM limit derived from the actual part (3/4 of physical), not hard-coded.
    try:
        vmem_cap = int(pltpu.get_tpu_info().vmem_capacity_bytes)
    except Exception:
        vmem_cap = 64 * 1024 * 1024
    vmem_limit = int(min((vmem_cap * 3) // 4, 100 * 1024 * 1024))

    kernel = functools.partial(_unet_up_kernel, cin=cin, cout=cout, h=h, w=w,
                               chunk=chunk, n_chunks=n_chunks)

    y_raw = pl.pallas_call(
        kernel,
        out_shape=jax.ShapeDtypeStruct((n, cout, total), x.dtype),
        grid=(n,),
        in_specs=[
            pl.BlockSpec((None, cin, h, w), lambda i: (i, 0, 0, 0)),
            pl.BlockSpec((4, cout, 4 * cin), lambda i: (0, 0, 0)),
        ],
        out_specs=pl.BlockSpec((None, cout, total), lambda i: (i, 0, 0)),
        scratch_shapes=[
            pltpu.VMEM((cin, h + 2, w + 2), x.dtype),        # halo-padded input
            pltpu.VMEM((9 * cin, hw), compute_dtype),         # 9 shifted windows
            pltpu.VMEM((cout, total), jnp.float32),           # f32 conv results
        ],
        compiler_params=pltpu.CompilerParams(
            dimension_semantics=("parallel",),
            vmem_limit_bytes=vmem_limit,
        ),
    )(x, w_phase)

    # Phase-major -> NCHW pixel shuffle (pure layout; fuses with the concat under jit).
    y = y_raw.reshape(n, cout, 2, 2, h, w)            # [n, c, a, b, i, j]
    y = jnp.transpose(y, (0, 1, 4, 2, 5, 3))          # [n, c, i, a, j, b]
    y = y.reshape(n, cout, S * h, S * w)

    # TODO(synk): for production shapes add a spatial/Cout grid axis with two-pass
    #             instance-norm stats so per-step scratch fits v7x's 64 MiB VMEM and
    #             both v7x TensorCores stay busy at batch 1-2; keep H*W (or folded
    #             batch*HW column count) a multiple of 128 so phase-slab boundaries
    #             stay lane-aligned.
    # TODO(synk): when Cout < 256 on v6e/v7x, stack phases along M (9-window
    #             accumulate formulation) to fill the 256x256 MXU rows.
    # TODO(synk): fold the W-interleave of the pixel shuffle into the kernel store
    #             (pltpu.bitcast 2xbf16->u32) to save one HBM pass over y.
    # TODO(synk): dropout (module default 0.0) not added; with dropout=0 no layer
    #             exists in the PyTorch module.
    return jnp.concatenate([y, skip_input], axis=1)


def _reference(x, skip_input, weight):
    """Pure-JAX reference of the PyTorch forward."""
    w_oihw = jnp.transpose(weight[:, :, ::-1, ::-1], (1, 0, 2, 3))  # (Cout, Cin, kh, kw)
    y = lax.conv_general_dilated(
        x, w_oihw, window_strides=(1, 1),
        padding=((K - 1 - P, K - 1 - P), (K - 1 - P, K - 1 - P)),
        lhs_dilation=(S, S),
        dimension_numbers=("NCHW", "OIHW", "NCHW"))
    mean = jnp.mean(y, axis=(2, 3), keepdims=True)
    var = jnp.mean(jnp.square(y - mean), axis=(2, 3), keepdims=True)
    y = jnp.maximum((y - mean) * lax.rsqrt(var + EPS), 0.0)
    return jnp.concatenate([y, skip_input], axis=1)


if __name__ == "__main__":
    batch, in_size, out_size, spatial = 2, 4, 8, 16

    key = jax.random.PRNGKey(0)
    kx, ks, kwt = jax.random.split(key, 3)
    x = jax.random.normal(kx, (batch, in_size, spatial, spatial), jnp.float32)
    skip = jax.random.normal(ks, (batch, out_size, 2 * spatial, 2 * spatial), jnp.float32)
    # PyTorch ConvTranspose2d weight layout: (in_channels, out_channels, kH, kW)
    weight = 0.2 * jax.random.normal(kwt, (in_size, out_size, K, K), jnp.float32)

    ref = jax.block_until_ready(_reference(x, skip, weight))

    # f32-operand path: tight correctness check against the pure-JAX reference.
    fwd_f32 = jax.jit(functools.partial(unet_up_forward, compute_dtype=jnp.float32))
    out_f32 = jax.block_until_ready(fwd_f32(x, skip, weight))
    assert out_f32.shape == (batch, 2 * out_size, 2 * spatial, 2 * spatial), out_f32.shape
    assert jnp.allclose(out_f32, ref, atol=1e-4, rtol=1e-4), \
        float(jnp.max(jnp.abs(out_f32 - ref)))

    # Default bf16 MXU-operand path (f32 accumulation / stats): looser tolerance.
    fwd_bf16 = jax.jit(functools.partial(unet_up_forward, compute_dtype=jnp.bfloat16))
    out_bf16 = jax.block_until_ready(fwd_bf16(x, skip, weight))
    assert out_bf16.shape == ref.shape, out_bf16.shape
    assert jnp.allclose(out_bf16, ref, atol=5e-2, rtol=5e-2), \
        float(jnp.max(jnp.abs(out_bf16 - ref)))

    print("KERNEL_OK")
</pallas_src>

<mosaic_0001>
module attributes {stable_mosaic.version = 11 : i64} {
  func.func @_unet_up_kernel(%arg0: i32, %arg1: memref<1x4x16x16xf32, #tpu.memory_space<vmem>>, %arg2: memref<4x8x16xf32, #tpu.memory_space<vmem>>, %arg3: memref<1x8x1024xf32, #tpu.memory_space<vmem>>, %arg4: memref<4x18x18xf32, #tpu.memory_space<vmem>>, %arg5: memref<36x256xf32, #tpu.memory_space<vmem>>, %arg6: memref<8x1024xf32, #tpu.memory_space<vmem>>) attributes {dimension_semantics = [#tpu.dimension_semantics<parallel>], iteration_bounds = array<i64: 2>, scalar_prefetch = 0 : i64, scratch_operands = 3 : i64, tpu.core_type = #tpu.core_type<tc>, window_params = [{transform_indices = @transform_0, window_bounds = array<i64: 1, 4, 16, 16>}, {pipeline_mode = #tpu.pipeline_mode<synchronous>, transform_indices = @transform_1, window_bounds = array<i64: 4, 8, 16>}, {transform_indices = @transform_2, window_bounds = array<i64: 1, 8, 1024>}]} {
    %cst = arith.constant 0.000000e+00 : f32
    %0 = vector.broadcast %cst : f32 to vector<4x1x18xf32>
    %c0 = arith.constant 0 : index
    %c0_0 = arith.constant 0 : index
    %c0_1 = arith.constant 0 : index
    %1 = vector.load %arg4[%c0, %c0_0, %c0_1] : memref<4x18x18xf32, #tpu.memory_space<vmem>>, vector<4x1x18xf32>
    tpu.vector_store %arg4[%c0, %c0_0, %c0_1], %0 {strides = array<i32>} : memref<4x18x18xf32, #tpu.memory_space<vmem>>, vector<4x1x18xf32>,
    %cst_2 = arith.constant 0.000000e+00 : f32
    %2 = vector.broadcast %cst_2 : f32 to vector<4x1x18xf32>
    %c0_3 = arith.constant 0 : index
    %c17 = arith.constant 17 : index
    %c0_4 = arith.constant 0 : index
    %3 = vector.load %arg4[%c0_3, %c17, %c0_4] : memref<4x18x18xf32, #tpu.memory_space<vmem>>, vector<4x1x18xf32>
    tpu.vector_store %arg4[%c0_3, %c17, %c0_4], %2 {strides = array<i32>} : memref<4x18x18xf32, #tpu.memory_space<vmem>>, vector<4x1x18xf32>,
    %cst_5 = arith.constant 0.000000e+00 : f32
    %4 = vector.broadcast %cst_5 : f32 to vector<4x18x1xf32>
    %c0_6 = arith.constant 0 : index
    %c0_7 = arith.constant 0 : index
    %c0_8 = arith.constant 0 : index
    %5 = vector.load %arg4[%c0_6, %c0_7, %c0_8] : memref<4x18x18xf32, #tpu.memory_space<vmem>>, vector<4x18x1xf32>
    tpu.vector_store %arg4[%c0_6, %c0_7, %c0_8], %4 {strides = array<i32>} : memref<4x18x18xf32, #tpu.memory_space<vmem>>, vector<4x18x1xf32>,
    %cst_9 = arith.constant 0.000000e+00 : f32
    %6 = vector.broadcast %cst_9 : f32 to vector<4x18x1xf32>
    %c0_10 = arith.constant 0 : index
    %c0_11 = arith.constant 0 : index
    %c17_12 = arith.constant 17 : index
    %7 = vector.load %arg4[%c0_10, %c0_11, %c17_12] : memref<4x18x18xf32, #tpu.memory_space<vmem>>, vector<4x18x1xf32>
    tpu.vector_store %arg4[%c0_10, %c0_11, %c17_12], %6 {strides = array<i32>} : memref<4x18x18xf32, #tpu.memory_space<vmem>>, vector<4x18x1xf32>,
    %c0_13 = arith.constant 0 : index
    %c0_14 = arith.constant 0 : index
    %c0_15 = arith.constant 0 : index
    %c0_16 = arith.constant 0 : index
    %8 = vector.load %arg1[%c0_13, %c0_14, %c0_15, %c0_16] : memref<1x4x16x16xf32, #tpu.memory_space<vmem>>, vector<1x4x16x16xf32>
    %9 = vector.shape_cast %8 : vector<1x4x16x16xf32> to vector<4x16x16xf32>
    %c0_17 = arith.constant 0 : index
    %c1 = arith.constant 1 : index
    %c1_18 = arith.constant 1 : index
    %10 = vector.load %arg4[%c0_17, %c1, %c1_18] : memref<4x18x18xf32, #tpu.memory_space<vmem>>, vector<4x16x16xf32>
    tpu.vector_store %arg4[%c0_17, %c1, %c1_18], %9 {strides = array<i32>} : memref<4x18x18xf32, #tpu.memory_space<vmem>>, vector<4x16x16xf32>,
    %c0_19 = arith.constant 0 : index
    %c0_20 = arith.constant 0 : index
    %c0_21 = arith.constant 0 : index
    %11 = vector.load %arg4[%c0_19, %c0_20, %c0_21] : memref<4x18x18xf32, #tpu.memory_space<vmem>>, vector<4x16x16xf32>
    %12 = vector.shape_cast %11 : vector<4x16x16xf32> to vector<4x256xf32>
    %c0_22 = arith.constant 0 : index
    %c0_23 = arith.constant 0 : index
    %13 = vector.load %arg5[%c0_22, %c0_23] : memref<36x256xf32, #tpu.memory_space<vmem>>, vector<4x256xf32>
    tpu.vector_store %arg5[%c0_22, %c0_23], %12 {strides = array<i32>} : memref<36x256xf32, #tpu.memory_space<vmem>>, vector<4x256xf32>,
    %c0_24 = arith.constant 0 : index
    %c0_25 = arith.constant 0 : index
    %c1_26 = arith.constant 1 : index
    %14 = vector.load %arg4[%c0_24, %c0_25, %c1_26] : memref<4x18x18xf32, #tpu.memory_space<vmem>>, vector<4x16x16xf32>
    %15 = vector.shape_cast %14 : vector<4x16x16xf32> to vector<4x256xf32>
    %c4 = arith.constant 4 : index
    %c0_27 = arith.constant 0 : index
    %16 = vector.load %arg5[%c4, %c0_27] : memref<36x256xf32, #tpu.memory_space<vmem>>, vector<4x256xf32>
    tpu.vector_store %arg5[%c4, %c0_27], %15 {strides = array<i32>} : memref<36x256xf32, #tpu.memory_space<vmem>>, vector<4x256xf32>,
    %c0_28 = arith.constant 0 : index
    %c0_29 = arith.constant 0 : index
    %c2 = arith.constant 2 : index
    %17 = vector.load %arg4[%c0_28, %c0_29, %c2] : memref<4x18x18xf32, #tpu.memory_space<vmem>>, vector<4x16x16xf32>
    %18 = vector.shape_cast %17 : vector<4x16x16xf32> to vector<4x256xf32>
    %c8 = arith.constant 8 : index
    %c0_30 = arith.constant 0 : index
    %19 = vector.load %arg5[%c8, %c0_30] : memref<36x256xf32, #tpu.memory_space<vmem>>, vector<4x256xf32>
    tpu.vector_store %arg5[%c8, %c0_30], %18 {strides = array<i32>} : memref<36x256xf32, #tpu.memory_space<vmem>>, vector<4x256xf32>,
    %c0_31 = arith.constant 0 : index
    %c1_32 = arith.constant 1 : index
    %c0_33 = arith.constant 0 : index
    %20 = vector.load %arg4[%c0_31, %c1_32, %c0_33] : memref<4x18x18xf32, #tpu.memory_space<vmem>>, vector<4x16x16xf32>
    %21 = vector.shape_cast %20 : vector<4x16x16xf32> to vector<4x256xf32>
    %c12 = arith.constant 12 : index
    %c0_34 = arith.constant 0 : index
    %22 = vector.load %arg5[%c12, %c0_34] : memref<36x256xf32, #tpu.memory_space<vmem>>, vector<4x256xf32>
    tpu.vector_store %arg5[%c12, %c0_34], %21 {strides = array<i32>} : memref<36x256xf32, #tpu.memory_space<vmem>>, vector<4x256xf32>,
    %c0_35 = arith.constant 0 : index
    %c1_36 = arith.constant 1 : index
    %c1_37 = arith.constant 1 : index
    %23 = vector.load %arg4[%c0_35, %c1_36, %c1_37] : memref<4x18x18xf32, #tpu.memory_space<vmem>>, vector<4x16x16xf32>
    %24 = vector.shape_cast %23 : vector<4x16x16xf32> to vector<4x256xf32>
    %c16 = arith.constant 16 : index
    %c0_38 = arith.constant 0 : index
    %25 = vector.load %arg5[%c16, %c0_38] : memref<36x256xf32, #tpu.memory_space<vmem>>, vector<4x256xf32>
    tpu.vector_store %arg5[%c16, %c0_38], %24 {strides = array<i32>} : memref<36x256xf32, #tpu.memory_space<vmem>>, vector<4x256xf32>,
    %c0_39 = arith.constant 0 : index
    %c1_40 = arith.constant 1 : index
    %c2_41 = arith.constant 2 : index
    %26 = vector.load %arg4[%c0_39, %c1_40, %c2_41] : memref<4x18x18xf32, #tpu.memory_space<vmem>>, vector<4x16x16xf32>
    %27 = vector.shape_cast %26 : vector<4x16x16xf32> to vector<4x256xf32>
    %c20 = arith.constant 20 : index
    %c0_42 = arith.constant 0 : index
    %28 = vector.load %arg5[%c20, %c0_42] : memref<36x256xf32, #tpu.memory_space<vmem>>, vector<4x256xf32>
    tpu.vector_store %arg5[%c20, %c0_42], %27 {strides = array<i32>} : memref<36x256xf32, #tpu.memory_space<vmem>>, vector<4x256xf32>,
    %c0_43 = arith.constant 0 : index
    %c2_44 = arith.constant 2 : index
    %c0_45 = arith.constant 0 : index
    %29 = vector.load %arg4[%c0_43, %c2_44, %c0_45] : memref<4x18x18xf32, #tpu.memory_space<vmem>>, vector<4x16x16xf32>
    %30 = vector.shape_cast %29 : vector<4x16x16xf32> to vector<4x256xf32>
    %c24 = arith.constant 24 : index
    %c0_46 = arith.constant 0 : index
    %31 = vector.load %arg5[%c24, %c0_46] : memref<36x256xf32, #tpu.memory_space<vmem>>, vector<4x256xf32>
    tpu.vector_store %arg5[%c24, %c0_46], %30 {strides = array<i32>} : memref<36x256xf32, #tpu.memory_space<vmem>>, vector<4x256xf32>,
    %c0_47 = arith.constant 0 : index
    %c2_48 = arith.constant 2 : index
    %c1_49 = arith.constant 1 : index
    %32 = vector.load %arg4[%c0_47, %c2_48, %c1_49] : memref<4x18x18xf32, #tpu.memory_space<vmem>>, vector<4x16x16xf32>
    %33 = vector.shape_cast %32 : vector<4x16x16xf32> to vector<4x256xf32>
    %c28 = arith.constant 28 : index
    %c0_50 = arith.constant 0 : index
    %34 = vector.load %arg5[%c28, %c0_50] : memref<36x256xf32, #tpu.memory_space<vmem>>, vector<4x256xf32>
    tpu.vector_store %arg5[%c28, %c0_50], %33 {strides = array<i32>} : memref<36x256xf32, #tpu.memory_space<vmem>>, vector<4x256xf32>,
    %c0_51 = arith.constant 0 : index
    %c2_52 = arith.constant 2 : index
    %c2_53 = arith.constant 2 : index
    %35 = vector.load %arg4[%c0_51, %c2_52, %c2_53] : memref<4x18x18xf32, #tpu.memory_space<vmem>>, vector<4x16x16xf32>
    %36 = vector.shape_cast %35 : vector<4x16x16xf32> to vector<4x256xf32>
    %c32 = arith.constant 32 : index
    %c0_54 = arith.constant 0 : index
    %37 = vector.load %arg5[%c32, %c0_54] : memref<36x256xf32, #tpu.memory_space<vmem>>, vector<4x256xf32>
    tpu.vector_store %arg5[%c32, %c0_54], %36 {strides = array<i32>} : memref<36x256xf32, #tpu.memory_space<vmem>>, vector<4x256xf32>,
    %cst_55 = arith.constant 0.000000e+00 : f32
    %38 = vector.broadcast %cst_55 : f32 to vector<8x1xf32>
    %cst_56 = arith.constant 0.000000e+00 : f32
    %39 = vector.broadcast %cst_56 : f32 to vector<8x1xf32>
    %c0_57 = arith.constant 0 : index
    %c0_58 = arith.constant 0 : index
    %c0_59 = arith.constant 0 : index
    %40 = vector.load %arg2[%c0_57, %c0_58, %c0_59] : memref<4x8x16xf32, #tpu.memory_space<vmem>>, vector<1x8x16xf32>
    %41 = vector.shape_cast %40 : vector<1x8x16xf32> to vector<8x16xf32>
    %42 = vector.extract_strided_slice %41 {offsets = [0, 0], sizes = [8, 8], strides = [1, 1]} : vector<8x16xf32> to vector<8x8xf32>
    %c0_60 = arith.constant 0 : index
    %c0_61 = arith.constant 0 : index
    %43 = vector.load %arg5[%c0_60, %c0_61] : memref<36x256xf32, #tpu.memory_space<vmem>>, vector<8x256xf32>
    %cst_62 = arith.constant dense<0.000000e+00> : vector<8x256xf32>
    %44 = tpu.matmul %42, %43, %cst_62 {dimension_numbers = #tpu.dot_dimension_numbers<[1], [0], [0], [1], [0, 0, 1, 1], [], []>} : vector<8x8xf32>, vector<8x256xf32>, vector<8x256xf32> -> vector<8x256xf32>
    %45 = vector.extract_strided_slice %41 {offsets = [0, 8], sizes = [8, 8], strides = [1, 1]} : vector<8x16xf32> to vector<8x8xf32>
    %c12_63 = arith.constant 12 : index
    %c0_64 = arith.constant 0 : index
    %46 = vector.load %arg5[%c12_63, %c0_64] : memref<36x256xf32, #tpu.memory_space<vmem>>, vector<8x256xf32>
    %cst_65 = arith.constant dense<0.000000e+00> : vector<8x256xf32>
    %47 = tpu.matmul %45, %46, %cst_65 {dimension_numbers = #tpu.dot_dimension_numbers<[1], [0], [0], [1], [0, 0, 1, 1], [], []>} : vector<8x8xf32>, vector<8x256xf32>, vector<8x256xf32> -> vector<8x256xf32>
    %48 = arith.addf %44, %47 : vector<8x256xf32>
    %c0_66 = arith.constant 0 : index
    %c0_67 = arith.constant 0 : index
    %49 = vector.load %arg6[%c0_66, %c0_67] : memref<8x1024xf32, #tpu.memory_space<vmem>>, vector<8x256xf32>
    tpu.vector_store %arg6[%c0_66, %c0_67], %48 {strides = array<i32>} : memref<8x1024xf32, #tpu.memory_space<vmem>>, vector<8x256xf32>,
    %cst_68 = arith.constant dense<0.000000e+00> : vector<8xf32>
    %50 = vector.multi_reduction <add>, %48, %cst_68 [1] : vector<8x256xf32> to vector<8xf32>
    %51 = vector.shape_cast %50 : vector<8xf32> to vector<8x1xf32>
    %52 = arith.addf %38, %51 : vector<8x1xf32>
    %53 = arith.mulf %48, %48 : vector<8x256xf32>
    %cst_69 = arith.constant dense<0.000000e+00> : vector<8xf32>
    %54 = vector.multi_reduction <add>, %53, %cst_69 [1] : vector<8x256xf32> to vector<8xf32>
    %55 = vector.shape_cast %54 : vector<8xf32> to vector<8x1xf32>
    %56 = arith.addf %39, %55 : vector<8x1xf32>
    %c1_70 = arith.constant 1 : index
    %c0_71 = arith.constant 0 : index
    %c0_72 = arith.constant 0 : index
    %57 = vector.load %arg2[%c1_70, %c0_71, %c0_72] : memref<4x8x16xf32, #tpu.memory_space<vmem>>, vector<1x8x16xf32>
    %58 = vector.shape_cast %57 : vector<1x8x16xf32> to vector<8x16xf32>
    %59 = vector.extract_strided_slice %58 {offsets = [0, 0], sizes = [8, 8], strides = [1, 1]} : vector<8x16xf32> to vector<8x8xf32>
    %c4_73 = arith.constant 4 : index
    %c0_74 = arith.constant 0 : index
    %60 = vector.load %arg5[%c4_73, %c0_74] : memref<36x256xf32, #tpu.memory_space<vmem>>, vector<8x256xf32>
    %cst_75 = arith.constant dense<0.000000e+00> : vector<8x256xf32>
    %61 = tpu.matmul %59, %60, %cst_75 {dimension_numbers = #tpu.dot_dimension_numbers<[1], [0], [0], [1], [0, 0, 1, 1], [], []>} : vector<8x8xf32>, vector<8x256xf32>, vector<8x256xf32> -> vector<8x256xf32>
    %62 = vector.extract_strided_slice %58 {offsets = [0, 8], sizes = [8, 8], strides = [1, 1]} : vector<8x16xf32> to vector<8x8xf32>
    %c16_76 = arith.constant 16 : index
    %c0_77 = arith.constant 0 : index
    %63 = vector.load %arg5[%c16_76, %c0_77] : memref<36x256xf32, #tpu.memory_space<vmem>>, vector<8x256xf32>
    %cst_78 = arith.constant dense<0.000000e+00> : vector<8x256xf32>
    %64 = tpu.matmul %62, %63, %cst_78 {dimension_numbers = #tpu.dot_dimension_numbers<[1], [0], [0], [1], [0, 0, 1, 1], [], []>} : vector<8x8xf32>, vector<8x256xf32>, vector<8x256xf32> -> vector<8x256xf32>
    %65 = arith.addf %61, %64 : vector<8x256xf32>
    %c0_79 = arith.constant 0 : index
    %c256 = arith.constant 256 : index
    %66 = vector.load %arg6[%c0_79, %c256] : memref<8x1024xf32, #tpu.memory_space<vmem>>, vector<8x256xf32>
    tpu.vector_store %arg6[%c0_79, %c256], %65 {strides = array<i32>} : memref<8x1024xf32, #tpu.memory_space<vmem>>, vector<8x256xf32>,
    %cst_80 = arith.constant dense<0.000000e+00> : vector<8xf32>
    %67 = vector.multi_reduction <add>, %65, %cst_80 [1] : vector<8x256xf32> to vector<8xf32>
    %68 = vector.shape_cast %67 : vector<8xf32> to vector<8x1xf32>
    %69 = arith.addf %52, %68 : vector<8x1xf32>
    %70 = arith.mulf %65, %65 : vector<8x256xf32>
    %cst_81 = arith.constant dense<0.000000e+00> : vector<8xf32>
    %71 = vector.multi_reduction <add>, %70, %cst_81 [1] : vector<8x256xf32> to vector<8xf32>
    %72 = vector.shape_cast %71 : vector<8xf32> to vector<8x1xf32>
    %73 = arith.addf %56, %72 : vector<8x1xf32>
    %c2_82 = arith.constant 2 : index
    %c0_83 = arith.constant 0 : index
    %c0_84 = arith.constant 0 : index
    %74 = vector.load %arg2[%c2_82, %c0_83, %c0_84] : memref<4x8x16xf32, #tpu.memory_space<vmem>>, vector<1x8x16xf32>
    %75 = vector.shape_cast %74 : vector<1x8x16xf32> to vector<8x16xf32>
    %76 = vector.extract_strided_slice %75 {offsets = [0, 0], sizes = [8, 8], strides = [1, 1]} : vector<8x16xf32> to vector<8x8xf32>
    %c12_85 = arith.constant 12 : index
    %c0_86 = arith.constant 0 : index
    %77 = vector.load %arg5[%c12_85, %c0_86] : memref<36x256xf32, #tpu.memory_space<vmem>>, vector<8x256xf32>
    %cst_87 = arith.constant dense<0.000000e+00> : vector<8x256xf32>
    %78 = tpu.matmul %76, %77, %cst_87 {dimension_numbers = #tpu.dot_dimension_numbers<[1], [0], [0], [1], [0, 0, 1, 1], [], []>} : vector<8x8xf32>, vector<8x256xf32>, vector<8x256xf32> -> vector<8x256xf32>
    %79 = vector.extract_strided_slice %75 {offsets = [0, 8], sizes = [8, 8], strides = [1, 1]} : vector<8x16xf32> to vector<8x8xf32>
    %c24_88 = arith.constant 24 : index
    %c0_89 = arith.constant 0 : index
    %80 = vector.load %arg5[%c24_88, %c0_89] : memref<36x256xf32, #tpu.memory_space<vmem>>, vector<8x256xf32>
    %cst_90 = arith.constant dense<0.000000e+00> : vector<8x256xf32>
    %81 = tpu.matmul %79, %80, %cst_90 {dimension_numbers = #tpu.dot_dimension_numbers<[1], [0], [0], [1], [0, 0, 1, 1], [], []>} : vector<8x8xf32>, vector<8x256xf32>, vector<8x256xf32> -> vector<8x256xf32>
    %82 = arith.addf %78, %81 : vector<8x256xf32>
    %c0_91 = arith.constant 0 : index
    %c512 = arith.constant 512 : index
    %83 = vector.load %arg6[%c0_91, %c512] : memref<8x1024xf32, #tpu.memory_space<vmem>>, vector<8x256xf32>
    tpu.vector_store %arg6[%c0_91, %c512], %82 {strides = array<i32>} : memref<8x1024xf32, #tpu.memory_space<vmem>>, vector<8x256xf32>,
    %cst_92 = arith.constant dense<0.000000e+00> : vector<8xf32>
    %84 = vector.multi_reduction <add>, %82, %cst_92 [1] : vector<8x256xf32> to vector<8xf32>
    %85 = vector.shape_cast %84 : vector<8xf32> to vector<8x1xf32>
    %86 = arith.addf %69, %85 : vector<8x1xf32>
    %87 = arith.mulf %82, %82 : vector<8x256xf32>
    %cst_93 = arith.constant dense<0.000000e+00> : vector<8xf32>
    %88 = vector.multi_reduction <add>, %87, %cst_93 [1] : vector<8x256xf32> to vector<8xf32>
    %89 = vector.shape_cast %88 : vector<8xf32> to vector<8x1xf32>
    %90 = arith.addf %73, %89 : vector<8x1xf32>
    %c3 = arith.constant 3 : index
    %c0_94 = arith.constant 0 : index
    %c0_95 = arith.constant 0 : index
    %91 = vector.load %arg2[%c3, %c0_94, %c0_95] : memref<4x8x16xf32, #tpu.memory_space<vmem>>, vector<1x8x16xf32>
    %92 = vector.shape_cast %91 : vector<1x8x16xf32> to vector<8x16xf32>
    %93 = vector.extract_strided_slice %92 {offsets = [0, 0], sizes = [8, 8], strides = [1, 1]} : vector<8x16xf32> to vector<8x8xf32>
    %c16_96 = arith.constant 16 : index
    %c0_97 = arith.constant 0 : index
    %94 = vector.load %arg5[%c16_96, %c0_97] : memref<36x256xf32, #tpu.memory_space<vmem>>, vector<8x256xf32>
    %cst_98 = arith.constant dense<0.000000e+00> : vector<8x256xf32>
    %95 = tpu.matmul %93, %94, %cst_98 {dimension_numbers = #tpu.dot_dimension_numbers<[1], [0], [0], [1], [0, 0, 1, 1], [], []>} : vector<8x8xf32>, vector<8x256xf32>, vector<8x256xf32> -> vector<8x256xf32>
    %96 = vector.extract_strided_slice %92 {offsets = [0, 8], sizes = [8, 8], strides = [1, 1]} : vector<8x16xf32> to vector<8x8xf32>
    %c28_99 = arith.constant 28 : index
    %c0_100 = arith.constant 0 : index
    %97 = vector.load %arg5[%c28_99, %c0_100] : memref<36x256xf32, #tpu.memory_space<vmem>>, vector<8x256xf32>
    %cst_101 = arith.constant dense<0.000000e+00> : vector<8x256xf32>
    %98 = tpu.matmul %96, %97, %cst_101 {dimension_numbers = #tpu.dot_dimension_numbers<[1], [0], [0], [1], [0, 0, 1, 1], [], []>} : vector<8x8xf32>, vector<8x256xf32>, vector<8x256xf32> -> vector<8x256xf32>
    %99 = arith.addf %95, %98 : vector<8x256xf32>
    %c0_102 = arith.constant 0 : index
    %c768 = arith.constant 768 : index
    %100 = vector.load %arg6[%c0_102, %c768] : memref<8x1024xf32, #tpu.memory_space<vmem>>, vector<8x256xf32>
    tpu.vector_store %arg6[%c0_102, %c768], %99 {strides = array<i32>} : memref<8x1024xf32, #tpu.memory_space<vmem>>, vector<8x256xf32>,
    %cst_103 = arith.constant dense<0.000000e+00> : vector<8xf32>
    %101 = vector.multi_reduction <add>, %99, %cst_103 [1] : vector<8x256xf32> to vector<8xf32>
    %102 = vector.shape_cast %101 : vector<8xf32> to vector<8x1xf32>
    %103 = arith.addf %86, %102 : vector<8x1xf32>
    %104 = arith.mulf %99, %99 : vector<8x256xf32>
    %cst_104 = arith.constant dense<0.000000e+00> : vector<8xf32>
    %105 = vector.multi_reduction <add>, %104, %cst_104 [1] : vector<8x256xf32> to vector<8xf32>
    %106 = vector.shape_cast %105 : vector<8xf32> to vector<8x1xf32>
    %107 = arith.addf %90, %106 : vector<8x1xf32>
    %cst_105 = arith.constant 9.765625E-4 : f32
    %108 = vector.broadcast %cst_105 : f32 to vector<8x1xf32>
    %109 = arith.mulf %103, %108 : vector<8x1xf32>
    %cst_106 = arith.constant 9.765625E-4 : f32
    %110 = vector.broadcast %cst_106 : f32 to vector<8x1xf32>
    %111 = arith.mulf %107, %110 : vector<8x1xf32>
    %112 = arith.mulf %109, %109 : vector<8x1xf32>
    %113 = arith.subf %111, %112 : vector<8x1xf32>
    %cst_107 = arith.constant 0.000000e+00 : f32
    %114 = vector.broadcast %cst_107 : f32 to vector<8x1xf32>
    %115 = arith.maximumf %113, %114 : vector<8x1xf32>
    %cst_108 = arith.constant 9.99999974E-6 : f32
    %116 = vector.broadcast %cst_108 : f32 to vector<8x1xf32>
    %117 = arith.addf %115, %116 : vector<8x1xf32>
    %118 = math.rsqrt %117 : vector<8x1xf32>
    %c0_109 = arith.constant 0 : index
    %c0_110 = arith.constant 0 : index
    %119 = vector.load %arg6[%c0_109, %c0_110] : memref<8x1024xf32, #tpu.memory_space<vmem>>, vector<8x1024xf32>
    %120 = vector.broadcast %109 : vector<8x1xf32> to vector<8x1024xf32>
    %121 = arith.subf %119, %120 : vector<8x1024xf32>
    %122 = vector.broadcast %118 : vector<8x1xf32> to vector<8x1024xf32>
    %123 = arith.mulf %121, %122 : vector<8x1024xf32>
    %cst_111 = arith.constant 0.000000e+00 : f32
    %124 = vector.broadcast %cst_111 : f32 to vector<8x1024xf32>
    %125 = arith.maximumf %123, %124 : vector<8x1024xf32>
    %c0_112 = arith.constant 0 : index
    %c0_113 = arith.constant 0 : index
    %c0_114 = arith.constant 0 : index
    %126 = vector.load %arg3[%c0_112, %c0_113, %c0_114] : memref<1x8x1024xf32, #tpu.memory_space<vmem>>, vector<1x8x1024xf32>
    %127 = vector.shape_cast %126 : vector<1x8x1024xf32> to vector<8x1024xf32>
    %128 = vector.shape_cast %125 : vector<8x1024xf32> to vector<1x8x1024xf32>
    tpu.vector_store %arg3[%c0_112, %c0_113, %c0_114], %128 {strides = array<i32>} : memref<1x8x1024xf32, #tpu.memory_space<vmem>>, vector<1x8x1024xf32>,
    return
  }
  func.func @transform_0(%arg0: i32) -> (i32, i32, i32, i32) {
    %c0_i32 = arith.constant 0 : i32
    %c0_i32_0 = arith.constant 0 : i32
    %c0_i32_1 = arith.constant 0 : i32
    %c0_i32_2 = arith.constant 0 : i32
    return %arg0, %c0_i32, %c0_i32_0, %c0_i32_1 : i32, i32, i32, i32
  }
  func.func @transform_1(%arg0: i32) -> (i32, i32, i32) {
    %c0_i32 = arith.constant 0 : i32
    %c0_i32_0 = arith.constant 0 : i32
    %c0_i32_1 = arith.constant 0 : i32
    %c0_i32_2 = arith.constant 0 : i32
    return %c0_i32, %c0_i32_0, %c0_i32_1 : i32, i32, i32
  }
  func.func @transform_2(%arg0: i32) -> (i32, i32, i32) {
    %c0_i32 = arith.constant 0 : i32
    %c0_i32_0 = arith.constant 0 : i32
    %c0_i32_1 = arith.constant 0 : i32
    return %arg0, %c0_i32, %c0_i32_0 : i32, i32, i32
  }
}

</mosaic_0001>

<llo_original>
// kernel: unet_up_forward.1
$region0: #{unet_up_forward.1}
  #allocation0 [shape = 'u32[]', space=smem, size = 0x4, offset = 0x4, fixed_abs, tag = 'smem constant byte address 0x4 - core index']
  #allocation1 [shape = 'u32[144,128]{1,0:T(1,128)}', space=vmem, size = 0x12000, scoped, tag = 'internal scratch']
  #allocation2 [shape = 'f32[4,18,18]{2,1,0:T(8,128)}', space=vmem, size = 0xc000, scoped, tag = 'scratch operand']
  #allocation3 [shape = 'f32[36,256]{1,0:T(8,128)}', space=vmem, size = 0xa000, scoped, tag = 'scratch operand']
  #allocation4 [shape = 'f32[8,1024]{1,0:T(8,128)}', space=vmem, size = 0x8000, scoped, tag = 'scratch operand']
  %s0 = inlined_call_operand.vmem [shape: f32[2,4,16,16], index: 0, kind: input, shape index: {}]
  %s1 = inlined_call_operand.vmem [shape: f32[4,8,16], index: 1, kind: input, shape index: {}]
  %s2 = inlined_call_operand.vmem [shape: f32[2,8,1024], index: 2, kind: output, shape index: {}]
  %s3 = sld [smem:[#allocation0]]
  $region41: #{unet_up_forward.1} parent=0
    _
  %s5 = ssub.s32 1, %s3
  %s6 = scalar_select 0, %s5, %s3
  loop: start=0, step=1, limit=4
  $region2: #{unet_up_forward.1} parent=0 // loop_pre_header
    _
  $region3: #{unet_up_forward.1} parent=0 // loop_header
    %s8 = sphi 0, %s12
    %p9 = scmp.ge.s32.totalorder %s8, 4
    %s18 = sphi 0, %s20
    %s21 = sphi 0, %s18
    %s22 = sphi 0, %s21
    %s38 = sphi 0, %s22
    %s42 = sphi 0, %s42
    %s44 = sphi 0, %s42
    %s45 = sphi 0, %s44
    %s59 = sphi 0, %s45
    %s65 = sphi 0, %s67
    %s68 = sphi 0, %s65
    %s69 = sphi 0, %s68
    %s85 = sphi 0, %s69
  $region4: #{unet_up_forward.1} parent=0 // loop_header_branch
    %11 = sbr.rel (%p9) target = $region8
  $region5: #{unet_up_forward.1} parent=0 // loop_body
    %s13 = ssub.s32 %s8, 1
    %s14 = ssub.s32 %s8, 2
    %s15 = sadd.s32 %s8, 1
    %s16 = ssub.s32 %s8, %s15
    %p17 = scmp.eq.s32.totalorder %s16, 0
    %s19 = sadd.s32 %s18, 1
    %s20 = scalar_select %p17, %s18, %s19
    %p23 = pneg %p17
    %p24 = scmp.eq.s32.totalorder %s8, 1
    %p25 = por %p23, %p24
    %p26 = scmp.ne.s32.totalorder %s18, %s21
    %p27 = scmp.eq.s32.totalorder %s8, 0
    %p28 = por %p26, %p27
    %p29 = scmp.ne.s32.totalorder %s18, %s21
    %p30 = scmp.eq.s32.totalorder %s13, 1
    %p31 = por %p29, %p30
    %p32 = scmp.ne.s32.totalorder %s21, %s22
    %p33 = scmp.eq.s32.totalorder %s13, 0
    %p34 = por %p32, %p33
    %p35 = scmp.ne.s32.totalorder %s21, %s22
    %p36 = scmp.eq.s32.totalorder %s14, 1
    %p37 = por %p35, %p36
    %p39 = scmp.ne.s32.totalorder %s22, %s38
    %p40 = scmp.eq.s32.totalorder %s14, 0
    %p41 = por %p39, %p40
    %s43 = sadd.s32 %s42, 1
    %p46 = scmp.eq.s32.totalorder %s8, 1
    %p47 = scmp.ne.s32.totalorder %s42, %s44
    %p48 = scmp.eq.s32.totalorder %s8, 0
    %p49 = por %p47, %p48
    %p50 = scmp.ne.s32.totalorder %s42, %s44
    %p51 = scmp.eq.s32.totalorder %s13, 1
    %p52 = por %p50, %p51
    %p53 = scmp.ne.s32.totalorder %s44, %s45
    %p54 = scmp.eq.s32.totalorder %s13, 0
    %p55 = por %p53, %p54
    %p56 = scmp.ne.s32.totalorder %s44, %s45
    %p57 = scmp.eq.s32.totalorder %s14, 1
    %p58 = por %p56, %p57
    %p60 = scmp.ne.s32.totalorder %s45, %s59
    %p61 = scmp.eq.s32.totalorder %s14, 0
    %p62 = por %p60, %p61
    %s63 = ssub.s32 %s8, %s15
    %p64 = scmp.eq.s32.totalorder %s63, 0
    %s66 = sadd.s32 %s65, 1
    %s67 = scalar_select %p64, %s65, %s66
    %p70 = pneg %p64
    %p71 = scmp.eq.s32.totalorder %s8, 1
    %p72 = por %p70, %p71
    %p73 = scmp.ne.s32.totalorder %s65, %s68
    %p74 = scmp.eq.s32.totalorder %s8, 0
    %p75 = por %p73, %p74
    %p76 = scmp.ne.s32.totalorder %s65, %s68
    %p77 = scmp.eq.s32.totalorder %s13, 1
    %p78 = por %p76, %p77
    %p79 = scmp.ne.s32.totalorder %s68, %s69
    %p80 = scmp.eq.s32.totalorder %s13, 0
    %p81 = por %p79, %p80
    %p82 = scmp.ne.s32.totalorder %s68, %s69
    %p83 = scmp.eq.s32.totalorder %s14, 1
    %p84 = por %p82, %p83
    %p86 = scmp.ne.s32.totalorder %s69, %s85
    %p87 = scmp.eq.s32.totalorder %s14, 0
    %p88 = por %p86, %p87
    %p89 = scmp.le.s32.totalorder 1, %s8
    %p90 = scmp.lt.s32.totalorder %s8, 3
    %p91 = pnand %p89, %p90
    %p92 = pneg %p91
    // Predicated region
    $region9: #{unet_up_forward.1} parent=5 // pred_check
      _
    $region10: #{unet_up_forward.1} parent=5 // pred_check_branch
      %94 = sbr.rel (%p91) target = $region12
    $region11: #{unet_up_forward.1} parent=5 // pred_region
      %s95 = ssub.s32 %s8, 1
      // Predicated region
      $region13: #{unet_up_forward.1} parent=11 // pred_check
        %p96 = pneg %p55
      $region14: #{unet_up_forward.1} parent=11 // pred_check_branch
        %98 = sbr.rel (%p96) target = $region16
      $region15: #{unet_up_forward.1} parent=11 // pred_region
        _
      $region16: #{unet_up_forward.1} parent=11 // pred_fallthru
        _
    $region12: #{unet_up_forward.1} parent=5 // pred_fallthru
      _
    %p99 = scmp.lt.s32.totalorder %s8, 2
    // Predicated region
    $region17: #{unet_up_forward.1} parent=5 // pred_check
      %p100 = pneg %p99
    $region18: #{unet_up_forward.1} parent=5 // pred_check_branch
      %102 = sbr.rel (%p100) target = $region20
    $region19: #{unet_up_forward.1} parent=5 // pred_region
      // Predicated region
      $region21: #{unet_up_forward.1} parent=19 // pred_check
        %p103 = pneg %p28
      $region22: #{unet_up_forward.1} parent=19 // pred_check_branch
        %105 = sbr.rel (%p103) target = $region24
      $region23: #{unet_up_forward.1} parent=19 // pred_region
        %p106 = scmp.lt.s32.totalorder %s8, 1
        %s107 = scalar_select %p106, %s8, 1
        %s108 = smul.addr %s107, 8
        %s109 = smul.addr %s108, 8
        %s110 = scalar_lea.vmem %s0, %s109
      $region24: #{unet_up_forward.1} parent=19 // pred_fallthru
        _
    $region20: #{unet_up_forward.1} parent=5 // pred_fallthru
      _
    %p111 = scmp.le.s32.totalorder 1, %s8
    %p112 = scmp.lt.s32.totalorder %s8, 3
    %p113 = pnand %p111, %p112
    %p114 = pneg %p113
    // Predicated region
    $region25: #{unet_up_forward.1} parent=5 // pred_check
      _
    $region26: #{unet_up_forward.1} parent=5 // pred_check_branch
      %116 = sbr.rel (%p113) target = $region28
    $region27: #{unet_up_forward.1} parent=5 // pred_region
      %s117 = ssub.s32 %s8, 1
      %p118 = scmp.lt.s32.totalorder %s13, 1
      %s119 = scalar_select %p118, %s13, 1
      %s120 = smul.addr %s119, 8
      %s121 = smul.addr %s120, 8
      %s122 = scalar_lea.vmem %s0, %s121
      %p123 = pneg %p34
      %p124 = pneg %p31
      %p125 = pneg %p55
      %p126 = pneg %p52
      %p127 = pneg %p81
      %p128 = pneg %p78
      %p129 = scmp.lt.s32.totalorder %s13, 1
      %s130 = scalar_select %p129, %s13, 1
      %s131 = smul.addr %s130, 8
      %s132 = smul.addr %s131, 8
      %s133 = scalar_lea.vmem %s2, %s132
      %p134 = scmp.lt.s32.totalorder %s13, 1
      %s135 = scalar_select %p134, %s13, 1
      %s136 = smul.addr %s135, 8
      %s137 = smul.addr %s136, 8
      %s138 = scalar_lea.vmem %s0, %s137
      %p139 = scmp.lt.s32.totalorder %s13, 1
      %s140 = scalar_select %p139, %s13, 1
      %s141 = smul.addr %s140, 8
      %s142 = smul.addr %s141, 8
      %s143 = scalar_lea.vmem %s2, %s142
      %vm144 = vcmask 139264
      %145 = vst.msk [vmem:[#allocation2] sm:$0x1] %vm144, 0.0
      %146 = vst.msk [vmem:[#allocation2 + $0x18] sm:$0x1] %vm144, 0.0
      %147 = vst.msk [vmem:[#allocation2 + $0x30] sm:$0x1] %vm144, 0.0
      %148 = vst.msk [vmem:[#allocation2 + $0x48] sm:$0x1] %vm144, 0.0
      %149 = vst.msk [vmem:[#allocation2 + $0x11] sm:$0x1] %vm144, 0.0
      %150 = vst.msk [vmem:[#allocation2 + $0x29] sm:$0x1] %vm144, 0.0
      %151 = vst.msk [vmem:[#allocation2 + $0x41] sm:$0x1] %vm144, 0.0
      %152 = vst.msk [vmem:[#allocation2 + $0x59] sm:$0x1] %vm144, 0.0
      %vm153 = vcmask 7168
      %154 = vst.msk [vmem:[#allocation2] sm:$0xff] %vm153, 0.0
      %155 = vst.msk [vmem:[#allocation2 + $0x8] sm:$0xff] %vm153, 0.0
      %vm156 = vcmask 1024
      %157 = vst.msk [vmem:[#allocation2 + $0x10] sm:$0x3] %vm156, 0.0
      %158 = vst.msk [vmem:[#allocation2 + $0x18] sm:$0xff] %vm153, 0.0
      %159 = vst.msk [vmem:[#allocation2 + $0x20] sm:$0xff] %vm153, 0.0
      %160 = vst.msk [vmem:[#allocation2 + $0x28] sm:$0x3] %vm156, 0.0
      %161 = vst.msk [vmem:[#allocation2 + $0x30] sm:$0xff] %vm153, 0.0
      %162 = vst.msk [vmem:[#allocation2 + $0x38] sm:$0xff] %vm153, 0.0
      %163 = vst.msk [vmem:[#allocation2 + $0x40] sm:$0x3] %vm156, 0.0
      %164 = vst.msk [vmem:[#allocation2 + $0x48] sm:$0xff] %vm153, 0.0
      %165 = vst.msk [vmem:[#allocation2 + $0x50] sm:$0xff] %vm153, 0.0
      %166 = vst.msk [vmem:[#allocation2 + $0x58] sm:$0x3] %vm156, 0.0
      %vm167 = vcmask 146568
      %168 = vst.msk [vmem:[#allocation2] sm:$0xff] %vm167, 0.0
      %169 = vst.msk [vmem:[#allocation2 + $0x8] sm:$0xff] %vm167, 0.0
      %vm170 = vcmask 140424
      %171 = vst.msk [vmem:[#allocation2 + $0x10] sm:$0x3] %vm170, 0.0
      %172 = vst.msk [vmem:[#allocation2 + $0x18] sm:$0xff] %vm167, 0.0
      %173 = vst.msk [vmem:[#allocation2 + $0x20] sm:$0xff] %vm167, 0.0
      %174 = vst.msk [vmem:[#allocation2 + $0x28] sm:$0x3] %vm170, 0.0
      %175 = vst.msk [vmem:[#allocation2 + $0x30] sm:$0xff] %vm167, 0.0
      %176 = vst.msk [vmem:[#allocation2 + $0x38] sm:$0xff] %vm167, 0.0
      %177 = vst.msk [vmem:[#allocation2 + $0x40] sm:$0x3] %vm170, 0.0
      %178 = vst.msk [vmem:[#allocation2 + $0x48] sm:$0xff] %vm167, 0.0
      %179 = vst.msk [vmem:[#allocation2 + $0x50] sm:$0xff] %vm167, 0.0
      %180 = vst.msk [vmem:[#allocation2 + $0x58] sm:$0x3] %vm170, 0.0
      %v181 = vld [vmem:[%s138] sm:$0xff]
      %v182 = vld [vmem:[%s138 + $0x8] sm:$0xff]
      %v183 = vld [vmem:[%s138 + $0x10] sm:$0xff]
      %v184 = vld [vmem:[%s138 + $0x18] sm:$0xff]
      %v185 = vld [vmem:[%s138 + $0x20] sm:$0xff]
      %v186 = vld [vmem:[%s138 + $0x28] sm:$0xff]
      %v187 = vld [vmem:[%s138 + $0x30] sm:$0xff]
      %v188 = vld [vmem:[%s138 + $0x38] sm:$0xff]
      %197 = vrot.lane.b32.xlu0 %v181, 1
      %v198 = vpop.permute.xlu0 %197
      %199 = vrot.lane.b32.xlu0 %v182, 1
      %v200 = vpop.permute.xlu0 %199
      %201 = vrot.lane.b32.xlu0 %v183, 1
      %v202 = vpop.permute.xlu0 %201
      %203 = vrot.lane.b32.xlu0 %v184, 1
      %v204 = vpop.permute.xlu0 %203
      %205 = vrot.lane.b32.xlu0 %v185, 1
      %v206 = vpop.permute.xlu0 %205
      %207 = vrot.lane.b32.xlu0 %v186, 1
      %v208 = vpop.permute.xlu0 %207
      %209 = vrot.lane.b32.xlu0 %v187, 1
      %v210 = vpop.permute.xlu0 %209
      %211 = vrot.lane.b32.xlu0 %v188, 1
      %v212 = vpop.permute.xlu0 %211
      %vm221 = vcmask 138248
      %222 = vst.msk [vmem:[#allocation2 + $0x1] sm:$0xff] %vm221, %v198
      %223 = vst.msk [vmem:[#allocation2 + $0x9] sm:$0xff] %vm221, %v200
      %224 = vst.msk [vmem:[#allocation2 + $0x19] sm:$0xff] %vm221, %v202
      %225 = vst.msk [vmem:[#allocation2 + $0x21] sm:$0xff] %vm221, %v204
      %226 = vst.msk [vmem:[#allocation2 + $0x31] sm:$0xff] %vm221, %v206
      %227 = vst.msk [vmem:[#allocation2 + $0x39] sm:$0xff] %vm221, %v208
      %228 = vst.msk [vmem:[#allocation2 + $0x49] sm:$0xff] %vm221, %v210
      %229 = vst.msk [vmem:[#allocation2 + $0x51] sm:$0xff] %vm221, %v212
      %v230 = vld [vmem:[#allocation2] sm:$0xff]
      %v231 = vld [vmem:[#allocation2 + $0x8] sm:$0xff]
      %v232 = vld [vmem:[#allocation2 + $0x18] sm:$0xff]
      %v233 = vld [vmem:[#allocation2 + $0x20] sm:$0xff]
      %v234 = vld [vmem:[#allocation2 + $0x30] sm:$0xff]
      %v235 = vld [vmem:[#allocation2 + $0x38] sm:$0xff]
      %v236 = vld [vmem:[#allocation2 + $0x48] sm:$0xff]
      %v237 = vld [vmem:[#allocation2 + $0x50] sm:$0xff]
      %v238 = vcombine.low %v230, %v234
      %v239 = vcombine.high %v230, %v234
      %v241 = vunpack.c.l.s4 1983009808
      %v242 = vunpack.c.0.s8 %v241
      %v243 = vlaneseq
      %v244 = vshrl.u32 %v243, 7
      %v245 = vsub.s32 %v242, %v244
      %v246 = vrot.slane %v238, %v245
      %v248 = vunpack.c.l.s4 1983009808
      %v249 = vunpack.c.0.s8 %v248
      %v250 = vlaneseq
      %v251 = vshrl.u32 %v250, 7
      %v252 = vsub.s32 %v249, %v251
      %v253 = vrot.slane %v239, %v252
      %v254 = vcombine.low %v232, %v236
      %v255 = vcombine.high %v232, %v236
      %v257 = vunpack.c.l.s4 1983009808
      %v258 = vunpack.c.0.s8 %v257
      %v259 = vlaneseq
      %v260 = vshrl.u32 %v259, 7
      %v261 = vsub.s32 %v258, %v260
      %v262 = vrot.slane %v254, %v261
      %v264 = vunpack.c.l.s4 1983009808
      %v265 = vunpack.c.0.s8 %v264
      %v266 = vlaneseq
      %v267 = vshrl.u32 %v266, 7
      %v268 = vsub.s32 %v265, %v267
      %v269 = vrot.slane %v255, %v268
      %v270 = vcombine.low %v246, %v262
      %v271 = vcombine.high %v246, %v262
      %v273 = vunpack.c.l.s4 1934713408
      %v274 = vunpack.c.0.s8 %v273
      %v275 = vlaneseq
      %v276 = vshrl.u32 %v275, 7
      %v277 = vsub.s32 %v274, %v276
      %v278 = vrot.slane %v270, %v277
      %v280 = vunpack.c.l.s4 1934713408
      %v281 = vunpack.c.0.s8 %v280
      %v282 = vlaneseq
      %v283 = vshrl.u32 %v282, 7
      %v284 = vsub.s32 %v281, %v283
      %v285 = vrot.slane %v271, %v284
      %v286 = vcombine.low %v253, %v269
      %v287 = vcombine.high %v253, %v269
      %v289 = vunpack.c.l.s4 1934713408
      %v290 = vunpack.c.0.s8 %v289
      %v291 = vlaneseq
      %v292 = vshrl.u32 %v291, 7
      %v293 = vsub.s32 %v290, %v292
      %v294 = vrot.slane %v286, %v293
      %v296 = vunpack.c.l.s4 1934713408
      %v297 = vunpack.c.0.s8 %v296
      %v298 = vlaneseq
      %v299 = vshrl.u32 %v298, 7
      %v300 = vsub.s32 %v297, %v299
      %v301 = vrot.slane %v287, %v300
      %v302 = vcombine.high %v278, 0.0
      %v303 = vcombine.high %v285, 0.0
      %v304 = vcombine.high %v294, 0.0
      %v305 = vcombine.high %v301, 0.0
      %v306 = vcombine.low %v231, %v235
      %v307 = vcombine.high %v231, %v235
      %v309 = vunpack.c.l.s4 1983009808
      %v310 = vunpack.c.0.s8 %v309
      %v311 = vlaneseq
      %v312 = vshrl.u32 %v311, 7
      %v313 = vsub.s32 %v310, %v312
      %v314 = vrot.slane %v306, %v313
      %v316 = vunpack.c.l.s4 1983009808
      %v317 = vunpack.c.0.s8 %v316
      %v318 = vlaneseq
      %v319 = vshrl.u32 %v318, 7
      %v320 = vsub.s32 %v317, %v319
      %v321 = vrot.slane %v307, %v320
      %v322 = vcombine.low %v233, %v237
      %v323 = vcombine.high %v233, %v237
      %v325 = vunpack.c.l.s4 1983009808
      %v326 = vunpack.c.0.s8 %v325
      %v327 = vlaneseq
      %v328 = vshrl.u32 %v327, 7
      %v329 = vsub.s32 %v326, %v328
      %v330 = vrot.slane %v322, %v329
      %v332 = vunpack.c.l.s4 1983009808
      %v333 = vunpack.c.0.s8 %v332
      %v334 = vlaneseq
      %v335 = vshrl.u32 %v334, 7
      %v336 = vsub.s32 %v333, %v335
      %v337 = vrot.slane %v323, %v336
      %v338 = vcombine.low %v314, %v330
      %v339 = vcombine.high %v314, %v330
      %v341 = vunpack.c.l.s4 1934713408
      %v342 = vunpack.c.0.s8 %v341
      %v343 = vlaneseq
      %v344 = vshrl.u32 %v343, 7
      %v345 = vsub.s32 %v342, %v344
      %v346 = vrot.slane %v338, %v345
      %v348 = vunpack.c.l.s4 1934713408
      %v349 = vunpack.c.0.s8 %v348
      %v350 = vlaneseq
      %v351 = vshrl.u32 %v350, 7
      %v352 = vsub.s32 %v349, %v351
      %v353 = vrot.slane %v339, %v352
      %v354 = vcombine.low %v321, %v337
      %v355 = vcombine.high %v321, %v337
      %v357 = vunpack.c.l.s4 1934713408
      %v358 = vunpack.c.0.s8 %v357
      %v359 = vlaneseq
      %v360 = vshrl.u32 %v359, 7
      %v361 = vsub.s32 %v358, %v360
      %v362 = vrot.slane %v354, %v361
      %v364 = vunpack.c.l.s4 1934713408
      %v365 = vunpack.c.0.s8 %v364
      %v366 = vlaneseq
      %v367 = vshrl.u32 %v366, 7
      %v368 = vsub.s32 %v365, %v367
      %v369 = vrot.slane %v355, %v368
      %v370 = vcombine.high %v346, 0.0
      %v371 = vcombine.high %v353, 0.0
      %v372 = vcombine.high %v362, 0.0
      %v373 = vcombine.high %v369, 0.0
      %375 = vrot.lane.b32.xlu0 %v302, 16
      %v376 = vpop.permute.xlu0 %375
      %379 = vrot.lane.b32.xlu0 %v285, 32
      %v380 = vpop.permute.xlu0 %379
      %383 = vrot.lane.b32.xlu0 %v303, 48
      %v384 = vpop.permute.xlu0 %383
      %387 = vrot.lane.b32.xlu0 %v294, 64
      %v388 = vpop.permute.xlu0 %387
      %391 = vrot.lane.b32.xlu0 %v304, 80
      %v392 = vpop.permute.xlu0 %391
      %395 = vrot.lane.b32.xlu0 %v301, 96
      %v396 = vpop.permute.xlu0 %395
      %399 = vrot.lane.b32.xlu0 %v305, 112
      %v400 = vpop.permute.xlu0 %399
      %403 = vrot.lane.b32.xlu0 %v370, 16
      %v404 = vpop.permute.xlu0 %403
      %407 = vrot.lane.b32.xlu0 %v353, 32
      %v408 = vpop.permute.xlu0 %407
      %411 = vrot.lane.b32.xlu0 %v371, 48
      %v412 = vpop.permute.xlu0 %411
      %415 = vrot.lane.b32.xlu0 %v362, 64
      %v416 = vpop.permute.xlu0 %415
      %419 = vrot.lane.b32.xlu0 %v372, 80
      %v420 = vpop.permute.xlu0 %419
      %423 = vrot.lane.b32.xlu0 %v369, 96
      %v424 = vpop.permute.xlu0 %423
      %427 = vrot.lane.b32.xlu0 %v373, 112
      %v428 = vpop.permute.xlu0 %427
      %vm430 = vcmask 130048
      %v431 = vsel %vm430, %v278, %v376
      %vm432 = vcmask 261120
      %v433 = vsel %vm432, %v431, %v380
      %vm434 = vcmask 392192
      %v435 = vsel %vm434, %v433, %v384
      %vm436 = vcmask 523264
      %v437 = vsel %vm436, %v435, %v388
      %vm438 = vcmask 654336
      %v439 = vsel %vm438, %v437, %v392
      %vm440 = vcmask 785408
      %v441 = vsel %vm440, %v439, %v396
      %vm442 = vcmask 916480
      %v443 = vsel %vm442, %v441, %v400
      %v444 = vsel %vm430, %v346, %v404
      %v445 = vsel %vm432, %v444, %v408
      %v446 = vsel %vm434, %v445, %v412
      %v447 = vsel %vm436, %v446, %v416
      %v448 = vsel %vm438, %v447, %v420
      %v449 = vsel %vm440, %v448, %v424
      %v450 = vsel %vm442, %v449, %v428
      %451 = vst [vmem:[#allocation3] sm:$0xf] %v443
      %452 = vst [vmem:[#allocation3 + $0x8] sm:$0xf] %v450
      %v453 = vld [vmem:[#allocation2] sm:$0xff]
      %v454 = vld [vmem:[#allocation2 + $0x8] sm:$0xff]
      %v455 = vld [vmem:[#allocation2 + $0x18] sm:$0xff]
      %v456 = vld [vmem:[#allocation2 + $0x20] sm:$0xff]
      %v457 = vld [vmem:[#allocation2 + $0x30] sm:$0xff]
      %v458 = vld [vmem:[#allocation2 + $0x38] sm:$0xff]
      %v459 = vld [vmem:[#allocation2 + $0x48] sm:$0xff]
      %v460 = vld [vmem:[#allocation2 + $0x50] sm:$0xff]
      %469 = vrot.lane.b32.xlu0 %v453, 127
      %v470 = vpop.permute.xlu0 %469
      %471 = vrot.lane.b32.xlu0 %v454, 127
      %v472 = vpop.permute.xlu0 %471
      %473 = vrot.lane.b32.xlu0 %v455, 127
      %v474 = vpop.permute.xlu0 %473
      %475 = vrot.lane.b32.xlu0 %v456, 127
      %v476 = vpop.permute.xlu0 %475
      %477 = vrot.lane.b32.xlu0 %v457, 127
      %v478 = vpop.permute.xlu0 %477
      %479 = vrot.lane.b32.xlu0 %v458, 127
      %v480 = vpop.permute.xlu0 %479
      %481 = vrot.lane.b32.xlu0 %v459, 127
      %v482 = vpop.permute.xlu0 %481
      %483 = vrot.lane.b32.xlu0 %v460, 127
      %v484 = vpop.permute.xlu0 %483
      %v493 = vcombine.low %v470, %v478
      %v494 = vcombine.high %v470, %v478
      %v496 = vunpack.c.l.s4 1983009808
      %v497 = vunpack.c.0.s8 %v496
      %v498 = vlaneseq
      %v499 = vshrl.u32 %v498, 7
      %v500 = vsub.s32 %v497, %v499
      %v501 = vrot.slane %v493, %v500
      %v503 = vunpack.c.l.s4 1983009808
      %v504 = vunpack.c.0.s8 %v503
      %v505 = vlaneseq
      %v506 = vshrl.u32 %v505, 7
      %v507 = vsub.s32 %v504, %v506
      %v508 = vrot.slane %v494, %v507
      %v509 = vcombine.low %v474, %v482
      %v510 = vcombine.high %v474, %v482
      %v512 = vunpack.c.l.s4 1983009808
      %v513 = vunpack.c.0.s8 %v512
      %v514 = vlaneseq
      %v515 = vshrl.u32 %v514, 7
      %v516 = vsub.s32 %v513, %v515
      %v517 = vrot.slane %v509, %v516
      %v519 = vunpack.c.l.s4 1983009808
      %v520 = vunpack.c.0.s8 %v519
      %v521 = vlaneseq
      %v522 = vshrl.u32 %v521, 7
      %v523 = vsub.s32 %v520, %v522
      %v524 = vrot.slane %v510, %v523
      %v525 = vcombine.low %v501, %v517
      %v526 = vcombine.high %v501, %v517
      %v528 = vunpack.c.l.s4 1934713408
      %v529 = vunpack.c.0.s8 %v528
      %v530 = vlaneseq
      %v531 = vshrl.u32 %v530, 7
      %v532 = vsub.s32 %v529, %v531
      %v533 = vrot.slane %v525, %v532
      %v535 = vunpack.c.l.s4 1934713408
      %v536 = vunpack.c.0.s8 %v535
      %v537 = vlaneseq
      %v538 = vshrl.u32 %v537, 7
      %v539 = vsub.s32 %v536, %v538
      %v540 = vrot.slane %v526, %v539
      %v541 = vcombine.low %v508, %v524
      %v542 = vcombine.high %v508, %v524
      %v544 = vunpack.c.l.s4 1934713408
      %v545 = vunpack.c.0.s8 %v544
      %v546 = vlaneseq
      %v547 = vshrl.u32 %v546, 7
      %v548 = vsub.s32 %v545, %v547
      %v549 = vrot.slane %v541, %v548
      %v551 = vunpack.c.l.s4 1934713408
      %v552 = vunpack.c.0.s8 %v551
      %v553 = vlaneseq
      %v554 = vshrl.u32 %v553, 7
      %v555 = vsub.s32 %v552, %v554
      %v556 = vrot.slane %v542, %v555
      %v557 = vcombine.high %v533, 0.0
      %v558 = vcombine.high %v540, 0.0
      %v559 = vcombine.high %v549, 0.0
      %v560 = vcombine.high %v556, 0.0
      %v561 = vcombine.low %v472, %v480
      %v562 = vcombine.high %v472, %v480
      %v564 = vunpack.c.l.s4 1983009808
      %v565 = vunpack.c.0.s8 %v564
      %v566 = vlaneseq
      %v567 = vshrl.u32 %v566, 7
      %v568 = vsub.s32 %v565, %v567
      %v569 = vrot.slane %v561, %v568
      %v571 = vunpack.c.l.s4 1983009808
      %v572 = vunpack.c.0.s8 %v571
      %v573 = vlaneseq
      %v574 = vshrl.u32 %v573, 7
      %v575 = vsub.s32 %v572, %v574
      %v576 = vrot.slane %v562, %v575
      %v577 = vcombine.low %v476, %v484
      %v578 = vcombine.high %v476, %v484
      %v580 = vunpack.c.l.s4 1983009808
      %v581 = vunpack.c.0.s8 %v580
      %v582 = vlaneseq
      %v583 = vshrl.u32 %v582, 7
      %v584 = vsub.s32 %v581, %v583
      %v585 = vrot.slane %v577, %v584
      %v587 = vunpack.c.l.s4 1983009808
      %v588 = vunpack.c.0.s8 %v587
      %v589 = vlaneseq
      %v590 = vshrl.u32 %v589, 7
      %v591 = vsub.s32 %v588, %v590
      %v592 = vrot.slane %v578, %v591
      %v593 = vcombine.low %v569, %v585
      %v594 = vcombine.high %v569, %v585
      %v596 = vunpack.c.l.s4 1934713408
      %v597 = vunpack.c.0.s8 %v596
      %v598 = vlaneseq
      %v599 = vshrl.u32 %v598, 7
      %v600 = vsub.s32 %v597, %v599
      %v601 = vrot.slane %v593, %v600
      %v603 = vunpack.c.l.s4 1934713408
      %v604 = vunpack.c.0.s8 %v603
      %v605 = vlaneseq
      %v606 = vshrl.u32 %v605, 7
      %v607 = vsub.s32 %v604, %v606
      %v608 = vrot.slane %v594, %v607
      %v609 = vcombine.low %v576, %v592
      %v610 = vcombine.high %v576, %v592
      %v612 = vunpack.c.l.s4 1934713408
      %v613 = vunpack.c.0.s8 %v612
      %v614 = vlaneseq
      %v615 = vshrl.u32 %v614, 7
      %v616 = vsub.s32 %v613, %v615
      %v617 = vrot.slane %v609, %v616
      %v619 = vunpack.c.l.s4 1934713408
      %v620 = vunpack.c.0.s8 %v619
      %v621 = vlaneseq
      %v622 = vshrl.u32 %v621, 7
      %v623 = vsub.s32 %v620, %v622
      %v624 = vrot.slane %v610, %v623
      %v625 = vcombine.high %v601, 0.0
      %v626 = vcombine.high %v608, 0.0
      %v627 = vcombine.high %v617, 0.0
      %v628 = vcombine.high %v624, 0.0
      %630 = vrot.lane.b32.xlu0 %v557, 16
      %v631 = vpop.permute.xlu0 %630
      %634 = vrot.lane.b32.xlu0 %v540, 32
      %v635 = vpop.permute.xlu0 %634
      %638 = vrot.lane.b32.xlu0 %v558, 48
      %v639 = vpop.permute.xlu0 %638
      %642 = vrot.lane.b32.xlu0 %v549, 64
      %v643 = vpop.permute.xlu0 %642
      %646 = vrot.lane.b32.xlu0 %v559, 80
      %v647 = vpop.permute.xlu0 %646
      %650 = vrot.lane.b32.xlu0 %v556, 96
      %v651 = vpop.permute.xlu0 %650
      %654 = vrot.lane.b32.xlu0 %v560, 112
      %v655 = vpop.permute.xlu0 %654
      %658 = vrot.lane.b32.xlu0 %v625, 16
      %v659 = vpop.permute.xlu0 %658
      %662 = vrot.lane.b32.xlu0 %v608, 32
      %v663 = vpop.permute.xlu0 %662
      %666 = vrot.lane.b32.xlu0 %v626, 48
      %v667 = vpop.permute.xlu0 %666
      %670 = vrot.lane.b32.xlu0 %v617, 64
      %v671 = vpop.permute.xlu0 %670
      %674 = vrot.lane.b32.xlu0 %v627, 80
      %v675 = vpop.permute.xlu0 %674
      %678 = vrot.lane.b32.xlu0 %v624, 96
      %v679 = vpop.permute.xlu0 %678
      %682 = vrot.lane.b32.xlu0 %v628, 112
      %v683 = vpop.permute.xlu0 %682
      %v685 = vsel %vm430, %v533, %v631
      %v686 = vsel %vm432, %v685, %v635
      %v687 = vsel %vm434, %v686, %v639
      %v688 = vsel %vm436, %v687, %v643
      %v689 = vsel %vm438, %v688, %v647
      %v690 = vsel %vm440, %v689, %v651
      %v691 = vsel %vm442, %v690, %v655
      %v692 = vsel %vm430, %v601, %v659
      %v693 = vsel %vm432, %v692, %v663
      %v694 = vsel %vm434, %v693, %v667
      %v695 = vsel %vm436, %v694, %v671
      %v696 = vsel %vm438, %v695, %v675
      %v697 = vsel %vm440, %v696, %v679
      %v698 = vsel %vm442, %v697, %v683
      %v701 = vrot.slane %v691, 4
      %v702 = vrot.slane %v698, 4
      %705 = vst [vmem:[#allocation3] sm:$0xf0] %v701
      %706 = vst [vmem:[#allocation3 + $0x8] sm:$0xf0] %v702
      %v707 = vld [vmem:[#allocation2] sm:$0xff]
      %v708 = vld [vmem:[#allocation2 + $0x8] sm:$0xff]
      %v709 = vld [vmem:[#allocation2 + $0x18] sm:$0xff]
      %v710 = vld [vmem:[#allocation2 + $0x20] sm:$0xff]
      %v711 = vld [vmem:[#allocation2 + $0x30] sm:$0xff]
      %v712 = vld [vmem:[#allocation2 + $0x38] sm:$0xff]
      %v713 = vld [vmem:[#allocation2 + $0x48] sm:$0xff]
      %v714 = vld [vmem:[#allocation2 + $0x50] sm:$0xff]
      %723 = vrot.lane.b32.xlu0 %v707, 126
      %v724 = vpop.permute.xlu0 %723
      %725 = vrot.lane.b32.xlu0 %v708, 126
      %v726 = vpop.permute.xlu0 %725
      %727 = vrot.lane.b32.xlu0 %v709, 126
      %v728 = vpop.permute.xlu0 %727
      %729 = vrot.lane.b32.xlu0 %v710, 126
      %v730 = vpop.permute.xlu0 %729
      %731 = vrot.lane.b32.xlu0 %v711, 126
      %v732 = vpop.permute.xlu0 %731
      %733 = vrot.lane.b32.xlu0 %v712, 126
      %v734 = vpop.permute.xlu0 %733
      %735 = vrot.lane.b32.xlu0 %v713, 126
      %v736 = vpop.permute.xlu0 %735
      %737 = vrot.lane.b32.xlu0 %v714, 126
      %v738 = vpop.permute.xlu0 %737
      %v747 = vcombine.low %v724, %v732
      %v748 = vcombine.high %v724, %v732
      %v750 = vunpack.c.l.s4 1983009808
      %v751 = vunpack.c.0.s8 %v750
      %v752 = vlaneseq
      %v753 = vshrl.u32 %v752, 7
      %v754 = vsub.s32 %v751, %v753
      %v755 = vrot.slane %v747, %v754
      %v757 = vunpack.c.l.s4 1983009808
      %v758 = vunpack.c.0.s8 %v757
      %v759 = vlaneseq
      %v760 = vshrl.u32 %v759, 7
      %v761 = vsub.s32 %v758, %v760
      %v762 = vrot.slane %v748, %v761
      %v763 = vcombine.low %v728, %v736
      %v764 = vcombine.high %v728, %v736
      %v766 = vunpack.c.l.s4 1983009808
      %v767 = vunpack.c.0.s8 %v766
      %v768 = vlaneseq
      %v769 = vshrl.u32 %v768, 7
      %v770 = vsub.s32 %v767, %v769
      %v771 = vrot.slane %v763, %v770
      %v773 = vunpack.c.l.s4 1983009808
      %v774 = vunpack.c.0.s8 %v773
      %v775 = vlaneseq
      %v776 = vshrl.u32 %v775, 7
      %v777 = vsub.s32 %v774, %v776
      %v778 = vrot.slane %v764, %v777
      %v779 = vcombine.low %v755, %v771
      %v780 = vcombine.high %v755, %v771
      %v782 = vunpack.c.l.s4 1934713408
      %v783 = vunpack.c.0.s8 %v782
      %v784 = vlaneseq
      %v785 = vshrl.u32 %v784, 7
      %v786 = vsub.s32 %v783, %v785
      %v787 = vrot.slane %v779, %v786
      %v789 = vunpack.c.l.s4 1934713408
      %v790 = vunpack.c.0.s8 %v789
      %v791 = vlaneseq
      %v792 = vshrl.u32 %v791, 7
      %v793 = vsub.s32 %v790, %v792
      %v794 = vrot.slane %v780, %v793
      %v795 = vcombine.low %v762, %v778
      %v796 = vcombine.high %v762, %v778
      %v798 = vunpack.c.l.s4 1934713408
      %v799 = vunpack.c.0.s8 %v798
      %v800 = vlaneseq
      %v801 = vshrl.u32 %v800, 7
      %v802 = vsub.s32 %v799, %v801
      %v803 = vrot.slane %v795, %v802
      %v805 = vunpack.c.l.s4 1934713408
      %v806 = vunpack.c.0.s8 %v805
      %v807 = vlaneseq
      %v808 = vshrl.u32 %v807, 7
      %v809 = vsub.s32 %v806, %v808
      %v810 = vrot.slane %v796, %v809
      %v811 = vcombine.high %v787, 0.0
      %v812 = vcombine.high %v794, 0.0
      %v813 = vcombine.high %v803, 0.0
      %v814 = vcombine.high %v810, 0.0
      %v815 = vcombine.low %v726, %v734
      %v816 = vcombine.high %v726, %v734
      %v818 = vunpack.c.l.s4 1983009808
      %v819 = vunpack.c.0.s8 %v818
      %v820 = vlaneseq
      %v821 = vshrl.u32 %v820, 7
      %v822 = vsub.s32 %v819, %v821
      %v823 = vrot.slane %v815, %v822
      %v825 = vunpack.c.l.s4 1983009808
      %v826 = vunpack.c.0.s8 %v825
      %v827 = vlaneseq
      %v828 = vshrl.u32 %v827, 7
      %v829 = vsub.s32 %v826, %v828
      %v830 = vrot.slane %v816, %v829
      %v831 = vcombine.low %v730, %v738
      %v832 = vcombine.high %v730, %v738
      %v834 = vunpack.c.l.s4 1983009808
      %v835 = vunpack.c.0.s8 %v834
      %v836 = vlaneseq
      %v837 = vshrl.u32 %v836, 7
      %v838 = vsub.s32 %v835, %v837
      %v839 = vrot.slane %v831, %v838
      %v841 = vunpack.c.l.s4 1983009808
      %v842 = vunpack.c.0.s8 %v841
      %v843 = vlaneseq
      %v844 = vshrl.u32 %v843, 7
      %v845 = vsub.s32 %v842, %v844
      %v846 = vrot.slane %v832, %v845
      %v847 = vcombine.low %v823, %v839
      %v848 = vcombine.high %v823, %v839
      %v850 = vunpack.c.l.s4 1934713408
      %v851 = vunpack.c.0.s8 %v850
      %v852 = vlaneseq
      %v853 = vshrl.u32 %v852, 7
      %v854 = vsub.s32 %v851, %v853
      %v855 = vrot.slane %v847, %v854
      %v857 = vunpack.c.l.s4 1934713408
      %v858 = vunpack.c.0.s8 %v857
      %v859 = vlaneseq
      %v860 = vshrl.u32 %v859, 7
      %v861 = vsub.s32 %v858, %v860
      %v862 = vrot.slane %v848, %v861
      %v863 = vcombine.low %v830, %v846
      %v864 = vcombine.high %v830, %v846
      %v866 = vunpack.c.l.s4 1934713408
      %v867 = vunpack.c.0.s8 %v866
      %v868 = vlaneseq
      %v869 = vshrl.u32 %v868, 7
      %v870 = vsub.s32 %v867, %v869
      %v871 = vrot.slane %v863, %v870
      %v873 = vunpack.c.l.s4 1934713408
      %v874 = vunpack.c.0.s8 %v873
      %v875 = vlaneseq
      %v876 = vshrl.u32 %v875, 7
      %v877 = vsub.s32 %v874, %v876
      %v878 = vrot.slane %v864, %v877
      %v879 = vcombine.high %v855, 0.0
      %v880 = vcombine.high %v862, 0.0
      %v881 = vcombine.high %v871, 0.0
      %v882 = vcombine.high %v878, 0.0
      %884 = vrot.lane.b32.xlu0 %v811, 16
      %v885 = vpop.permute.xlu0 %884
      %888 = vrot.lane.b32.xlu0 %v794, 32
      %v889 = vpop.permute.xlu0 %888
      %892 = vrot.lane.b32.xlu0 %v812, 48
      %v893 = vpop.permute.xlu0 %892
      %896 = vrot.lane.b32.xlu0 %v803, 64
      %v897 = vpop.permute.xlu0 %896
      %900 = vrot.lane.b32.xlu0 %v813, 80
      %v901 = vpop.permute.xlu0 %900
      %904 = vrot.lane.b32.xlu0 %v810, 96
      %v905 = vpop.permute.xlu0 %904
      %908 = vrot.lane.b32.xlu0 %v814, 112
      %v909 = vpop.permute.xlu0 %908
      %912 = vrot.lane.b32.xlu0 %v879, 16
      %v913 = vpop.permute.xlu0 %912
      %916 = vrot.lane.b32.xlu0 %v862, 32
      %v917 = vpop.permute.xlu0 %916
      %920 = vrot.lane.b32.xlu0 %v880, 48
      %v921 = vpop.permute.xlu0 %920
      %924 = vrot.lane.b32.xlu0 %v871, 64
      %v925 = vpop.permute.xlu0 %924
      %928 = vrot.lane.b32.xlu0 %v881, 80
      %v929 = vpop.permute.xlu0 %928
      %932 = vrot.lane.b32.xlu0 %v878, 96
      %v933 = vpop.permute.xlu0 %932
      %936 = vrot.lane.b32.xlu0 %v882, 112
      %v937 = vpop.permute.xlu0 %936
      %v939 = vsel %vm430, %v787, %v885
      %v940 = vsel %vm432, %v939, %v889
      %v941 = vsel %vm434, %v940, %v893
      %v942 = vsel %vm436, %v941, %v897
      %v943 = vsel %vm438, %v942, %v901
      %v944 = vsel %vm440, %v943, %v905
      %v945 = vsel %vm442, %v944, %v909
      %v946 = vsel %vm430, %v855, %v913
      %v947 = vsel %vm432, %v946, %v917
      %v948 = vsel %vm434, %v947, %v921
      %v949 = vsel %vm436, %v948, %v925
      %v950 = vsel %vm438, %v949, %v929
      %v951 = vsel %vm440, %v950, %v933
      %v952 = vsel %vm442, %v951, %v937
      %953 = vst [vmem:[#allocation3 + $0x10] sm:$0xf] %v945
      %954 = vst [vmem:[#allocation3 + $0x18] sm:$0xf] %v952
      %v955 = vld [vmem:[#allocation2 + $0x1] sm:$0xff]
      %v956 = vld [vmem:[#allocation2 + $0x9] sm:$0xff]
      %v957 = vld [vmem:[#allocation2 + $0x19] sm:$0xff]
      %v958 = vld [vmem:[#allocation2 + $0x21] sm:$0xff]
      %v959 = vld [vmem:[#allocation2 + $0x31] sm:$0xff]
      %v960 = vld [vmem:[#allocation2 + $0x39] sm:$0xff]
      %v961 = vld [vmem:[#allocation2 + $0x49] sm:$0xff]
      %v962 = vld [vmem:[#allocation2 + $0x51] sm:$0xff]
      %v963 = vcombine.low %v955, %v959
      %v964 = vcombine.high %v955, %v959
      %v966 = vunpack.c.l.s4 1983009808
      %v967 = vunpack.c.0.s8 %v966
      %v968 = vlaneseq
      %v969 = vshrl.u32 %v968, 7
      %v970 = vsub.s32 %v967, %v969
      %v971 = vrot.slane %v963, %v970
      %v973 = vunpack.c.l.s4 1983009808
      %v974 = vunpack.c.0.s8 %v973
      %v975 = vlaneseq
      %v976 = vshrl.u32 %v975, 7
      %v977 = vsub.s32 %v974, %v976
      %v978 = vrot.slane %v964, %v977
      %v979 = vcombine.low %v957, %v961
      %v980 = vcombine.high %v957, %v961
      %v982 = vunpack.c.l.s4 1983009808
      %v983 = vunpack.c.0.s8 %v982
      %v984 = vlaneseq
      %v985 = vshrl.u32 %v984, 7
      %v986 = vsub.s32 %v983, %v985
      %v987 = vrot.slane %v979, %v986
      %v989 = vunpack.c.l.s4 1983009808
      %v990 = vunpack.c.0.s8 %v989
      %v991 = vlaneseq
      %v992 = vshrl.u32 %v991, 7
      %v993 = vsub.s32 %v990, %v992
      %v994 = vrot.slane %v980, %v993
      %v995 = vcombine.low %v971, %v987
      %v996 = vcombine.high %v971, %v987
      %v998 = vunpack.c.l.s4 1934713408
      %v999 = vunpack.c.0.s8 %v998
      %v1000 = vlaneseq
      %v1001 = vshrl.u32 %v1000, 7
      %v1002 = vsub.s32 %v999, %v1001
      %v1003 = vrot.slane %v995, %v1002
      %v1005 = vunpack.c.l.s4 1934713408
      %v1006 = vunpack.c.0.s8 %v1005
      %v1007 = vlaneseq
      %v1008 = vshrl.u32 %v1007, 7
      %v1009 = vsub.s32 %v1006, %v1008
      %v1010 = vrot.slane %v996, %v1009
      %v1011 = vcombine.low %v978, %v994
      %v1012 = vcombine.high %v978, %v994
      %v1014 = vunpack.c.l.s4 1934713408
      %v1015 = vunpack.c.0.s8 %v1014
      %v1016 = vlaneseq
      %v1017 = vshrl.u32 %v1016, 7
      %v1018 = vsub.s32 %v1015, %v1017
      %v1019 = vrot.slane %v1011, %v1018
      %v1021 = vunpack.c.l.s4 1934713408
      %v1022 = vunpack.c.0.s8 %v1021
      %v1023 = vlaneseq
      %v1024 = vshrl.u32 %v1023, 7
      %v1025 = vsub.s32 %v1022, %v1024
      %v1026 = vrot.slane %v1012, %v1025
      %v1027 = vcombine.high %v1003, 0.0
      %v1028 = vcombine.high %v1010, 0.0
      %v1029 = vcombine.high %v1019, 0.0
      %v1030 = vcombine.high %v1026, 0.0
      %v1031 = vcombine.low %v956, %v960
      %v1032 = vcombine.high %v956, %v960
      %v1034 = vunpack.c.l.s4 1983009808
      %v1035 = vunpack.c.0.s8 %v1034
      %v1036 = vlaneseq
      %v1037 = vshrl.u32 %v1036, 7
      %v1038 = vsub.s32 %v1035, %v1037
      %v1039 = vrot.slane %v1031, %v1038
      %v1041 = vunpack.c.l.s4 1983009808
      %v1042 = vunpack.c.0.s8 %v1041
      %v1043 = vlaneseq
      %v1044 = vshrl.u32 %v1043, 7
      %v1045 = vsub.s32 %v1042, %v1044
      %v1046 = vrot.slane %v1032, %v1045
      %v1047 = vcombine.low %v958, %v962
      %v1048 = vcombine.high %v958, %v962
      %v1050 = vunpack.c.l.s4 1983009808
      %v1051 = vunpack.c.0.s8 %v1050
      %v1052 = vlaneseq
      %v1053 = vshrl.u32 %v1052, 7
      %v1054 = vsub.s32 %v1051, %v1053
      %v1055 = vrot.slane %v1047, %v1054
      %v1057 = vunpack.c.l.s4 1983009808
      %v1058 = vunpack.c.0.s8 %v1057
      %v1059 = vlaneseq
      %v1060 = vshrl.u32 %v1059, 7
      %v1061 = vsub.s32 %v1058, %v1060
      %v1062 = vrot.slane %v1048, %v1061
      %v1063 = vcombine.low %v1039, %v1055
      %v1064 = vcombine.high %v1039, %v1055
      %v1066 = vunpack.c.l.s4 1934713408
      %v1067 = vunpack.c.0.s8 %v1066
      %v1068 = vlaneseq
      %v1069 = vshrl.u32 %v1068, 7
      %v1070 = vsub.s32 %v1067, %v1069
      %v1071 = vrot.slane %v1063, %v1070
      %v1073 = vunpack.c.l.s4 1934713408
      %v1074 = vunpack.c.0.s8 %v1073
      %v1075 = vlaneseq
      %v1076 = vshrl.u32 %v1075, 7
      %v1077 = vsub.s32 %v1074, %v1076
      %v1078 = vrot.slane %v1064, %v1077
      %v1079 = vcombine.low %v1046, %v1062
      %v1080 = vcombine.high %v1046, %v1062
      %v1082 = vunpack.c.l.s4 1934713408
      %v1083 = vunpack.c.0.s8 %v1082
      %v1084 = vlaneseq
      %v1085 = vshrl.u32 %v1084, 7
      %v1086 = vsub.s32 %v1083, %v1085
      %v1087 = vrot.slane %v1079, %v1086
      %v1089 = vunpack.c.l.s4 1934713408
      %v1090 = vunpack.c.0.s8 %v1089
      %v1091 = vlaneseq
      %v1092 = vshrl.u32 %v1091, 7
      %v1093 = vsub.s32 %v1090, %v1092
      %v1094 = vrot.slane %v1080, %v1093
      %v1095 = vcombine.high %v1071, 0.0
      %v1096 = vcombine.high %v1078, 0.0
      %v1097 = vcombine.high %v1087, 0.0
      %v1098 = vcombine.high %v1094, 0.0
      %1100 = vrot.lane.b32.xlu0 %v1027, 16
      %v1101 = vpop.permute.xlu0 %1100
      %1104 = vrot.lane.b32.xlu0 %v1010, 32
      %v1105 = vpop.permute.xlu0 %1104
      %1108 = vrot.lane.b32.xlu0 %v1028, 48
      %v1109 = vpop.permute.xlu0 %1108
      %1112 = vrot.lane.b32.xlu0 %v1019, 64
      %v1113 = vpop.permute.xlu0 %1112
      %1116 = vrot.lane.b32.xlu0 %v1029, 80
      %v1117 = vpop.permute.xlu0 %1116
      %1120 = vrot.lane.b32.xlu0 %v1026, 96
      %v1121 = vpop.permute.xlu0 %1120
      %1124 = vrot.lane.b32.xlu0 %v1030, 112
      %v1125 = vpop.permute.xlu0 %1124
      %1128 = vrot.lane.b32.xlu0 %v1095, 16
      %v1129 = vpop.permute.xlu0 %1128
      %1132 = vrot.lane.b32.xlu0 %v1078, 32
      %v1133 = vpop.permute.xlu0 %1132
      %1136 = vrot.lane.b32.xlu0 %v1096, 48
      %v1137 = vpop.permute.xlu0 %1136
      %1140 = vrot.lane.b32.xlu0 %v1087, 64
      %v1141 = vpop.permute.xlu0 %1140
      %1144 = vrot.lane.b32.xlu0 %v1097, 80
      %v1145 = vpop.permute.xlu0 %1144
      %1148 = vrot.lane.b32.xlu0 %v1094, 96
      %v1149 = vpop.permute.xlu0 %1148
      %1152 = vrot.lane.b32.xlu0 %v1098, 112
      %v1153 = vpop.permute.xlu0 %1152
      %v1155 = vsel %vm430, %v1003, %v1101
      %v1156 = vsel %vm432, %v1155, %v1105
      %v1157 = vsel %vm434, %v1156, %v1109
      %v1158 = vsel %vm436, %v1157, %v1113
      %v1159 = vsel %vm438, %v1158, %v1117
      %v1160 = vsel %vm440, %v1159, %v1121
      %v1161 = vsel %vm442, %v1160, %v1125
      %v1162 = vsel %vm430, %v1071, %v1129
      %v1163 = vsel %vm432, %v1162, %v1133
      %v1164 = vsel %vm434, %v1163, %v1137
      %v1165 = vsel %vm436, %v1164, %v1141
      %v1166 = vsel %vm438, %v1165, %v1145
      %v1167 = vsel %vm440, %v1166, %v1149
      %v1168 = vsel %vm442, %v1167, %v1153
      %v1171 = vrot.slane %v1161, 4
      %v1172 = vrot.slane %v1168, 4
      %1175 = vst [vmem:[#allocation3 + $0x10] sm:$0xf0] %v1171
      %1176 = vst [vmem:[#allocation3 + $0x18] sm:$0xf0] %v1172
      %v1177 = vld [vmem:[#allocation2 + $0x1] sm:$0xff]
      %v1178 = vld [vmem:[#allocation2 + $0x9] sm:$0xff]
      %v1179 = vld [vmem:[#allocation2 + $0x19] sm:$0xff]
      %v1180 = vld [vmem:[#allocation2 + $0x21] sm:$0xff]
      %v1181 = vld [vmem:[#allocation2 + $0x31] sm:$0xff]
      %v1182 = vld [vmem:[#allocation2 + $0x39] sm:$0xff]
      %v1183 = vld [vmem:[#allocation2 + $0x49] sm:$0xff]
      %v1184 = vld [vmem:[#allocation2 + $0x51] sm:$0xff]
      %1193 = vrot.lane.b32.xlu0 %v1177, 127
      %v1194 = vpop.permute.xlu0 %1193
      %1195 = vrot.lane.b32.xlu0 %v1178, 127
      %v1196 = vpop.permute.xlu0 %1195
      %1197 = vrot.lane.b32.xlu0 %v1179, 127
      %v1198 = vpop.permute.xlu0 %1197
      %1199 = vrot.lane.b32.xlu0 %v1180, 127
      %v1200 = vpop.permute.xlu0 %1199
      %1201 = vrot.lane.b32.xlu0 %v1181, 127
      %v1202 = vpop.permute.xlu0 %1201
      %1203 = vrot.lane.b32.xlu0 %v1182, 127
      %v1204 = vpop.permute.xlu0 %1203
      %1205 = vrot.lane.b32.xlu0 %v1183, 127
      %v1206 = vpop.permute.xlu0 %1205
      %1207 = vrot.lane.b32.xlu0 %v1184, 127
      %v1208 = vpop.permute.xlu0 %1207
      %v1217 = vcombine.low %v1194, %v1202
      %v1218 = vcombine.high %v1194, %v1202
      %v1220 = vunpack.c.l.s4 1983009808
      %v1221 = vunpack.c.0.s8 %v1220
      %v1222 = vlaneseq
      %v1223 = vshrl.u32 %v1222, 7
      %v1224 = vsub.s32 %v1221, %v1223
      %v1225 = vrot.slane %v1217, %v1224
      %v1227 = vunpack.c.l.s4 1983009808
      %v1228 = vunpack.c.0.s8 %v1227
      %v1229 = vlaneseq
      %v1230 = vshrl.u32 %v1229, 7
      %v1231 = vsub.s32 %v1228, %v1230
      %v1232 = vrot.slane %v1218, %v1231
      %v1233 = vcombine.low %v1198, %v1206
      %v1234 = vcombine.high %v1198, %v1206
      %v1236 = vunpack.c.l.s4 1983009808
      %v1237 = vunpack.c.0.s8 %v1236
      %v1238 = vlaneseq
      %v1239 = vshrl.u32 %v1238, 7
      %v1240 = vsub.s32 %v1237, %v1239
      %v1241 = vrot.slane %v1233, %v1240
      %v1243 = vunpack.c.l.s4 1983009808
      %v1244 = vunpack.c.0.s8 %v1243
      %v1245 = vlaneseq
      %v1246 = vshrl.u32 %v1245, 7
      %v1247 = vsub.s32 %v1244, %v1246
      %v1248 = vrot.slane %v1234, %v1247
      %v1249 = vcombine.low %v1225, %v1241
      %v1250 = vcombine.high %v1225, %v1241
      %v1252 = vunpack.c.l.s4 1934713408
      %v1253 = vunpack.c.0.s8 %v1252
      %v1254 = vlaneseq
      %v1255 = vshrl.u32 %v1254, 7
      %v1256 = vsub.s32 %v1253, %v1255
      %v1257 = vrot.slane %v1249, %v1256
      %v1259 = vunpack.c.l.s4 1934713408
      %v1260 = vunpack.c.0.s8 %v1259
      %v1261 = vlaneseq
      %v1262 = vshrl.u32 %v1261, 7
      %v1263 = vsub.s32 %v1260, %v1262
      %v1264 = vrot.slane %v1250, %v1263
      %v1265 = vcombine.low %v1232, %v1248
      %v1266 = vcombine.high %v1232, %v1248
      %v1268 = vunpack.c.l.s4 1934713408
      %v1269 = vunpack.c.0.s8 %v1268
      %v1270 = vlaneseq
      %v1271 = vshrl.u32 %v1270, 7
      %v1272 = vsub.s32 %v1269, %v1271
      %v1273 = vrot.slane %v1265, %v1272
      %v1275 = vunpack.c.l.s4 1934713408
      %v1276 = vunpack.c.0.s8 %v1275
      %v1277 = vlaneseq
      %v1278 = vshrl.u32 %v1277, 7
      %v1279 = vsub.s32 %v1276, %v1278
      %v1280 = vrot.slane %v1266, %v1279
      %v1281 = vcombine.high %v1257, 0.0
      %v1282 = vcombine.high %v1264, 0.0
      %v1283 = vcombine.high %v1273, 0.0
      %v1284 = vcombine.high %v1280, 0.0
      %v1285 = vcombine.low %v1196, %v1204
      %v1286 = vcombine.high %v1196, %v1204
      %v1288 = vunpack.c.l.s4 1983009808
      %v1289 = vunpack.c.0.s8 %v1288
      %v1290 = vlaneseq
      %v1291 = vshrl.u32 %v1290, 7
      %v1292 = vsub.s32 %v1289, %v1291
      %v1293 = vrot.slane %v1285, %v1292
      %v1295 = vunpack.c.l.s4 1983009808
      %v1296 = vunpack.c.0.s8 %v1295
      %v1297 = vlaneseq
      %v1298 = vshrl.u32 %v1297, 7
      %v1299 = vsub.s32 %v1296, %v1298
      %v1300 = vrot.slane %v1286, %v1299
      %v1301 = vcombine.low %v1200, %v1208
      %v1302 = vcombine.high %v1200, %v1208
      %v1304 = vunpack.c.l.s4 1983009808
      %v1305 = vunpack.c.0.s8 %v1304
      %v1306 = vlaneseq
      %v1307 = vshrl.u32 %v1306, 7
      %v1308 = vsub.s32 %v1305, %v1307
      %v1309 = vrot.slane %v1301, %v1308
      %v1311 = vunpack.c.l.s4 1983009808
      %v1312 = vunpack.c.0.s8 %v1311
      %v1313 = vlaneseq
      %v1314 = vshrl.u32 %v1313, 7
      %v1315 = vsub.s32 %v1312, %v1314
      %v1316 = vrot.slane %v1302, %v1315
      %v1317 = vcombine.low %v1293, %v1309
      %v1318 = vcombine.high %v1293, %v1309
      %v1320 = vunpack.c.l.s4 1934713408
      %v1321 = vunpack.c.0.s8 %v1320
      %v1322 = vlaneseq
      %v1323 = vshrl.u32 %v1322, 7
      %v1324 = vsub.s32 %v1321, %v1323
      %v1325 = vrot.slane %v1317, %v1324
      %v1327 = vunpack.c.l.s4 1934713408
      %v1328 = vunpack.c.0.s8 %v1327
      %v1329 = vlaneseq
      %v1330 = vshrl.u32 %v1329, 7
      %v1331 = vsub.s32 %v1328, %v1330
      %v1332 = vrot.slane %v1318, %v1331
      %v1333 = vcombine.low %v1300, %v1316
      %v1334 = vcombine.high %v1300, %v1316
      %v1336 = vunpack.c.l.s4 1934713408
      %v1337 = vunpack.c.0.s8 %v1336
      %v1338 = vlaneseq
      %v1339 = vshrl.u32 %v1338, 7
      %v1340 = vsub.s32 %v1337, %v1339
      %v1341 = vrot.slane %v1333, %v1340
      %v1343 = vunpack.c.l.s4 1934713408
      %v1344 = vunpack.c.0.s8 %v1343
      %v1345 = vlaneseq
      %v1346 = vshrl.u32 %v1345, 7
      %v1347 = vsub.s32 %v1344, %v1346
      %v1348 = vrot.slane %v1334, %v1347
      %v1349 = vcombine.high %v1325, 0.0
      %v1350 = vcombine.high %v1332, 0.0
      %v1351 = vcombine.high %v1341, 0.0
      %v1352 = vcombine.high %v1348, 0.0
      %1354 = vrot.lane.b32.xlu0 %v1281, 16
      %v1355 = vpop.permute.xlu0 %1354
      %1358 = vrot.lane.b32.xlu0 %v1264, 32
      %v1359 = vpop.permute.xlu0 %1358
      %1362 = vrot.lane.b32.xlu0 %v1282, 48
      %v1363 = vpop.permute.xlu0 %1362
      %1366 = vrot.lane.b32.xlu0 %v1273, 64
      %v1367 = vpop.permute.xlu0 %1366
      %1370 = vrot.lane.b32.xlu0 %v1283, 80
      %v1371 = vpop.permute.xlu0 %1370
      %1374 = vrot.lane.b32.xlu0 %v1280, 96
      %v1375 = vpop.permute.xlu0 %1374
      %1378 = vrot.lane.b32.xlu0 %v1284, 112
      %v1379 = vpop.permute.xlu0 %1378
      %1382 = vrot.lane.b32.xlu0 %v1349, 16
      %v1383 = vpop.permute.xlu0 %1382
      %1386 = vrot.lane.b32.xlu0 %v1332, 32
      %v1387 = vpop.permute.xlu0 %1386
      %1390 = vrot.lane.b32.xlu0 %v1350, 48
      %v1391 = vpop.permute.xlu0 %1390
      %1394 = vrot.lane.b32.xlu0 %v1341, 64
      %v1395 = vpop.permute.xlu0 %1394
      %1398 = vrot.lane.b32.xlu0 %v1351, 80
      %v1399 = vpop.permute.xlu0 %1398
      %1402 = vrot.lane.b32.xlu0 %v1348, 96
      %v1403 = vpop.permute.xlu0 %1402
      %1406 = vrot.lane.b32.xlu0 %v1352, 112
      %v1407 = vpop.permute.xlu0 %1406
      %v1409 = vsel %vm430, %v1257, %v1355
      %v1410 = vsel %vm432, %v1409, %v1359
      %v1411 = vsel %vm434, %v1410, %v1363
      %v1412 = vsel %vm436, %v1411, %v1367
      %v1413 = vsel %vm438, %v1412, %v1371
      %v1414 = vsel %vm440, %v1413, %v1375
      %v1415 = vsel %vm442, %v1414, %v1379
      %v1416 = vsel %vm430, %v1325, %v1383
      %v1417 = vsel %vm432, %v1416, %v1387
      %v1418 = vsel %vm434, %v1417, %v1391
      %v1419 = vsel %vm436, %v1418, %v1395
      %v1420 = vsel %vm438, %v1419, %v1399
      %v1421 = vsel %vm440, %v1420, %v1403
      %v1422 = vsel %vm442, %v1421, %v1407
      %1423 = vst [vmem:[#allocation3 + $0x20] sm:$0xf] %v1415
      %1424 = vst [vmem:[#allocation3 + $0x28] sm:$0xf] %v1422
      %v1425 = vld [vmem:[#allocation2 + $0x1] sm:$0xff]
      %v1426 = vld [vmem:[#allocation2 + $0x9] sm:$0xff]
      %v1427 = vld [vmem:[#allocation2 + $0x19] sm:$0xff]
      %v1428 = vld [vmem:[#allocation2 + $0x21] sm:$0xff]
      %v1429 = vld [vmem:[#allocation2 + $0x31] sm:$0xff]
      %v1430 = vld [vmem:[#allocation2 + $0x39] sm:$0xff]
      %v1431 = vld [vmem:[#allocation2 + $0x49] sm:$0xff]
      %v1432 = vld [vmem:[#allocation2 + $0x51] sm:$0xff]
      %1441 = vrot.lane.b32.xlu0 %v1425, 126
      %v1442 = vpop.permute.xlu0 %1441
      %1443 = vrot.lane.b32.xlu0 %v1426, 126
      %v1444 = vpop.permute.xlu0 %1443
      %1445 = vrot.lane.b32.xlu0 %v1427, 126
      %v1446 = vpop.permute.xlu0 %1445
      %1447 = vrot.lane.b32.xlu0 %v1428, 126
      %v1448 = vpop.permute.xlu0 %1447
      %1449 = vrot.lane.b32.xlu0 %v1429, 126
      %v1450 = vpop.permute.xlu0 %1449
      %1451 = vrot.lane.b32.xlu0 %v1430, 126
      %v1452 = vpop.permute.xlu0 %1451
      %1453 = vrot.lane.b32.xlu0 %v1431, 126
      %v1454 = vpop.permute.xlu0 %1453
      %1455 = vrot.lane.b32.xlu0 %v1432, 126
      %v1456 = vpop.permute.xlu0 %1455
      %v1465 = vcombine.low %v1442, %v1450
      %v1466 = vcombine.high %v1442, %v1450
      %v1468 = vunpack.c.l.s4 1983009808
      %v1469 = vunpack.c.0.s8 %v1468
      %v1470 = vlaneseq
      %v1471 = vshrl.u32 %v1470, 7
      %v1472 = vsub.s32 %v1469, %v1471
      %v1473 = vrot.slane %v1465, %v1472
      %v1475 = vunpack.c.l.s4 1983009808
      %v1476 = vunpack.c.0.s8 %v1475
      %v1477 = vlaneseq
      %v1478 = vshrl.u32 %v1477, 7
      %v1479 = vsub.s32 %v1476, %v1478
      %v1480 = vrot.slane %v1466, %v1479
      %v1481 = vcombine.low %v1446, %v1454
      %v1482 = vcombine.high %v1446, %v1454
      %v1484 = vunpack.c.l.s4 1983009808
      %v1485 = vunpack.c.0.s8 %v1484
      %v1486 = vlaneseq
      %v1487 = vshrl.u32 %v1486, 7
      %v1488 = vsub.s32 %v1485, %v1487
      %v1489 = vrot.slane %v1481, %v1488
      %v1491 = vunpack.c.l.s4 1983009808
      %v1492 = vunpack.c.0.s8 %v1491
      %v1493 = vlaneseq
      %v1494 = vshrl.u32 %v1493, 7
      %v1495 = vsub.s32 %v1492, %v1494
      %v1496 = vrot.slane %v1482, %v1495
      %v1497 = vcombine.low %v1473, %v1489
      %v1498 = vcombine.high %v1473, %v1489
      %v1500 = vunpack.c.l.s4 1934713408
      %v1501 = vunpack.c.0.s8 %v1500
      %v1502 = vlaneseq
      %v1503 = vshrl.u32 %v1502, 7
      %v1504 = vsub.s32 %v1501, %v1503
      %v1505 = vrot.slane %v1497, %v1504
      %v1507 = vunpack.c.l.s4 1934713408
      %v1508 = vunpack.c.0.s8 %v1507
      %v1509 = vlaneseq
      %v1510 = vshrl.u32 %v1509, 7
      %v1511 = vsub.s32 %v1508, %v1510
      %v1512 = vrot.slane %v1498, %v1511
      %v1513 = vcombine.low %v1480, %v1496
      %v1514 = vcombine.high %v1480, %v1496
      %v1516 = vunpack.c.l.s4 1934713408
      %v1517 = vunpack.c.0.s8 %v1516
      %v1518 = vlaneseq
      %v1519 = vshrl.u32 %v1518, 7
      %v1520 = vsub.s32 %v1517, %v1519
      %v1521 = vrot.slane %v1513, %v1520
      %v1523 = vunpack.c.l.s4 1934713408
      %v1524 = vunpack.c.0.s8 %v1523
      %v1525 = vlaneseq
      %v1526 = vshrl.u32 %v1525, 7
      %v1527 = vsub.s32 %v1524, %v1526
      %v1528 = vrot.slane %v1514, %v1527
      %v1529 = vcombine.high %v1505, 0.0
      %v1530 = vcombine.high %v1512, 0.0
      %v1531 = vcombine.high %v1521, 0.0
      %v1532 = vcombine.high %v1528, 0.0
      %v1533 = vcombine.low %v1444, %v1452
      %v1534 = vcombine.high %v1444, %v1452
      %v1536 = vunpack.c.l.s4 1983009808
      %v1537 = vunpack.c.0.s8 %v1536
      %v1538 = vlaneseq
      %v1539 = vshrl.u32 %v1538, 7
      %v1540 = vsub.s32 %v1537, %v1539
      %v1541 = vrot.slane %v1533, %v1540
      %v1543 = vunpack.c.l.s4 1983009808
      %v1544 = vunpack.c.0.s8 %v1543
      %v1545 = vlaneseq
      %v1546 = vshrl.u32 %v1545, 7
      %v1547 = vsub.s32 %v1544, %v1546
      %v1548 = vrot.slane %v1534, %v1547
      %v1549 = vcombine.low %v1448, %v1456
      %v1550 = vcombine.high %v1448, %v1456
      %v1552 = vunpack.c.l.s4 1983009808
      %v1553 = vunpack.c.0.s8 %v1552
      %v1554 = vlaneseq
      %v1555 = vshrl.u32 %v1554, 7
      %v1556 = vsub.s32 %v1553, %v1555
      %v1557 = vrot.slane %v1549, %v1556
      %v1559 = vunpack.c.l.s4 1983009808
      %v1560 = vunpack.c.0.s8 %v1559
      %v1561 = vlaneseq
      %v1562 = vshrl.u32 %v1561, 7
      %v1563 = vsub.s32 %v1560, %v1562
      %v1564 = vrot.slane %v1550, %v1563
      %v1565 = vcombine.low %v1541, %v1557
      %v1566 = vcombine.high %v1541, %v1557
      %v1568 = vunpack.c.l.s4 1934713408
      %v1569 = vunpack.c.0.s8 %v1568
      %v1570 = vlaneseq
      %v1571 = vshrl.u32 %v1570, 7
      %v1572 = vsub.s32 %v1569, %v1571
      %v1573 = vrot.slane %v1565, %v1572
      %v1575 = vunpack.c.l.s4 1934713408
      %v1576 = vunpack.c.0.s8 %v1575
      %v1577 = vlaneseq
      %v1578 = vshrl.u32 %v1577, 7
      %v1579 = vsub.s32 %v1576, %v1578
      %v1580 = vrot.slane %v1566, %v1579
      %v1581 = vcombine.low %v1548, %v1564
      %v1582 = vcombine.high %v1548, %v1564
      %v1584 = vunpack.c.l.s4 1934713408
      %v1585 = vunpack.c.0.s8 %v1584
      %v1586 = vlaneseq
      %v1587 = vshrl.u32 %v1586, 7
      %v1588 = vsub.s32 %v1585, %v1587
      %v1589 = vrot.slane %v1581, %v1588
      %v1591 = vunpack.c.l.s4 1934713408
      %v1592 = vunpack.c.0.s8 %v1591
      %v1593 = vlaneseq
      %v1594 = vshrl.u32 %v1593, 7
      %v1595 = vsub.s32 %v1592, %v1594
      %v1596 = vrot.slane %v1582, %v1595
      %v1597 = vcombine.high %v1573, 0.0
      %v1598 = vcombine.high %v1580, 0.0
      %v1599 = vcombine.high %v1589, 0.0
      %v1600 = vcombine.high %v1596, 0.0
      %1602 = vrot.lane.b32.xlu0 %v1529, 16
      %v1603 = vpop.permute.xlu0 %1602
      %1606 = vrot.lane.b32.xlu0 %v1512, 32
      %v1607 = vpop.permute.xlu0 %1606
      %1610 = vrot.lane.b32.xlu0 %v1530, 48
      %v1611 = vpop.permute.xlu0 %1610
      %1614 = vrot.lane.b32.xlu0 %v1521, 64
      %v1615 = vpop.permute.xlu0 %1614
      %1618 = vrot.lane.b32.xlu0 %v1531, 80
      %v1619 = vpop.permute.xlu0 %1618
      %1622 = vrot.lane.b32.xlu0 %v1528, 96
      %v1623 = vpop.permute.xlu0 %1622
      %1626 = vrot.lane.b32.xlu0 %v1532, 112
      %v1627 = vpop.permute.xlu0 %1626
      %1630 = vrot.lane.b32.xlu0 %v1597, 16
      %v1631 = vpop.permute.xlu0 %1630
      %1634 = vrot.lane.b32.xlu0 %v1580, 32
      %v1635 = vpop.permute.xlu0 %1634
      %1638 = vrot.lane.b32.xlu0 %v1598, 48
      %v1639 = vpop.permute.xlu0 %1638
      %1642 = vrot.lane.b32.xlu0 %v1589, 64
      %v1643 = vpop.permute.xlu0 %1642
      %1646 = vrot.lane.b32.xlu0 %v1599, 80
      %v1647 = vpop.permute.xlu0 %1646
      %1650 = vrot.lane.b32.xlu0 %v1596, 96
      %v1651 = vpop.permute.xlu0 %1650
      %1654 = vrot.lane.b32.xlu0 %v1600, 112
      %v1655 = vpop.permute.xlu0 %1654
      %v1657 = vsel %vm430, %v1505, %v1603
      %v1658 = vsel %vm432, %v1657, %v1607
      %v1659 = vsel %vm434, %v1658, %v1611
      %v1660 = vsel %vm436, %v1659, %v1615
      %v1661 = vsel %vm438, %v1660, %v1619
      %v1662 = vsel %vm440, %v1661, %v1623
      %v1663 = vsel %vm442, %v1662, %v1627
      %v1664 = vsel %vm430, %v1573, %v1631
      %v1665 = vsel %vm432, %v1664, %v1635
      %v1666 = vsel %vm434, %v1665, %v1639
      %v1667 = vsel %vm436, %v1666, %v1643
      %v1668 = vsel %vm438, %v1667, %v1647
      %v1669 = vsel %vm440, %v1668, %v1651
      %v1670 = vsel %vm442, %v1669, %v1655
      %v1673 = vrot.slane %v1663, 4
      %v1674 = vrot.slane %v1670, 4
      %1677 = vst [vmem:[#allocation3 + $0x20] sm:$0xf0] %v1673
      %1678 = vst [vmem:[#allocation3 + $0x28] sm:$0xf0] %v1674
      %v1679 = vld [vmem:[#allocation2 + $0x2] sm:$0xff]
      %v1680 = vld [vmem:[#allocation2 + $0xa] sm:$0xff]
      %v1681 = vld [vmem:[#allocation2 + $0x1a] sm:$0xff]
      %v1682 = vld [vmem:[#allocation2 + $0x22] sm:$0xff]
      %v1683 = vld [vmem:[#allocation2 + $0x32] sm:$0xff]
      %v1684 = vld [vmem:[#allocation2 + $0x3a] sm:$0xff]
      %v1685 = vld [vmem:[#allocation2 + $0x4a] sm:$0xff]
      %v1686 = vld [vmem:[#allocation2 + $0x52] sm:$0xff]
      %v1687 = vcombine.low %v1679, %v1683
      %v1688 = vcombine.high %v1679, %v1683
      %v1690 = vunpack.c.l.s4 1983009808
      %v1691 = vunpack.c.0.s8 %v1690
      %v1692 = vlaneseq
      %v1693 = vshrl.u32 %v1692, 7
      %v1694 = vsub.s32 %v1691, %v1693
      %v1695 = vrot.slane %v1687, %v1694
      %v1697 = vunpack.c.l.s4 1983009808
      %v1698 = vunpack.c.0.s8 %v1697
      %v1699 = vlaneseq
      %v1700 = vshrl.u32 %v1699, 7
      %v1701 = vsub.s32 %v1698, %v1700
      %v1702 = vrot.slane %v1688, %v1701
      %v1703 = vcombine.low %v1681, %v1685
      %v1704 = vcombine.high %v1681, %v1685
      %v1706 = vunpack.c.l.s4 1983009808
      %v1707 = vunpack.c.0.s8 %v1706
      %v1708 = vlaneseq
      %v1709 = vshrl.u32 %v1708, 7
      %v1710 = vsub.s32 %v1707, %v1709
      %v1711 = vrot.slane %v1703, %v1710
      %v1713 = vunpack.c.l.s4 1983009808
      %v1714 = vunpack.c.0.s8 %v1713
      %v1715 = vlaneseq
      %v1716 = vshrl.u32 %v1715, 7
      %v1717 = vsub.s32 %v1714, %v1716
      %v1718 = vrot.slane %v1704, %v1717
      %v1719 = vcombine.low %v1695, %v1711
      %v1720 = vcombine.high %v1695, %v1711
      %v1722 = vunpack.c.l.s4 1934713408
      %v1723 = vunpack.c.0.s8 %v1722
      %v1724 = vlaneseq
      %v1725 = vshrl.u32 %v1724, 7
      %v1726 = vsub.s32 %v1723, %v1725
      %v1727 = vrot.slane %v1719, %v1726
      %v1729 = vunpack.c.l.s4 1934713408
      %v1730 = vunpack.c.0.s8 %v1729
      %v1731 = vlaneseq
      %v1732 = vshrl.u32 %v1731, 7
      %v1733 = vsub.s32 %v1730, %v1732
      %v1734 = vrot.slane %v1720, %v1733
      %v1735 = vcombine.low %v1702, %v1718
      %v1736 = vcombine.high %v1702, %v1718
      %v1738 = vunpack.c.l.s4 1934713408
      %v1739 = vunpack.c.0.s8 %v1738
      %v1740 = vlaneseq
      %v1741 = vshrl.u32 %v1740, 7
      %v1742 = vsub.s32 %v1739, %v1741
      %v1743 = vrot.slane %v1735, %v1742
      %v1745 = vunpack.c.l.s4 1934713408
      %v1746 = vunpack.c.0.s8 %v1745
      %v1747 = vlaneseq
      %v1748 = vshrl.u32 %v1747, 7
      %v1749 = vsub.s32 %v1746, %v1748
      %v1750 = vrot.slane %v1736, %v1749
      %v1751 = vcombine.high %v1727, 0.0
      %v1752 = vcombine.high %v1734, 0.0
      %v1753 = vcombine.high %v1743, 0.0
      %v1754 = vcombine.high %v1750, 0.0
      %v1755 = vcombine.low %v1680, %v1684
      %v1756 = vcombine.high %v1680, %v1684
      %v1758 = vunpack.c.l.s4 1983009808
      %v1759 = vunpack.c.0.s8 %v1758
      %v1760 = vlaneseq
      %v1761 = vshrl.u32 %v1760, 7
      %v1762 = vsub.s32 %v1759, %v1761
      %v1763 = vrot.slane %v1755, %v1762
      %v1765 = vunpack.c.l.s4 1983009808
      %v1766 = vunpack.c.0.s8 %v1765
      %v1767 = vlaneseq
      %v1768 = vshrl.u32 %v1767, 7
      %v1769 = vsub.s32 %v1766, %v1768
      %v1770 = vrot.slane %v1756, %v1769
      %v1771 = vcombine.low %v1682, %v1686
      %v1772 = vcombine.high %v1682, %v1686
      %v1774 = vunpack.c.l.s4 1983009808
      %v1775 = vunpack.c.0.s8 %v1774
      %v1776 = vlaneseq
      %v1777 = vshrl.u32 %v1776, 7
      %v1778 = vsub.s32 %v1775, %v1777
      %v1779 = vrot.slane %v1771, %v1778
      %v1781 = vunpack.c.l.s4 1983009808
      %v1782 = vunpack.c.0.s8 %v1781
      %v1783 = vlaneseq
      %v1784 = vshrl.u32 %v1783, 7
      %v1785 = vsub.s32 %v1782, %v1784
      %v1786 = vrot.slane %v1772, %v1785
      %v1787 = vcombine.low %v1763, %v1779
      %v1788 = vcombine.high %v1763, %v1779
      %v1790 = vunpack.c.l.s4 1934713408
      %v1791 = vunpack.c.0.s8 %v1790
      %v1792 = vlaneseq
      %v1793 = vshrl.u32 %v1792, 7
      %v1794 = vsub.s32 %v1791, %v1793
      %v1795 = vrot.slane %v1787, %v1794
      %v1797 = vunpack.c.l.s4 1934713408
      %v1798 = vunpack.c.0.s8 %v1797
      %v1799 = vlaneseq
      %v1800 = vshrl.u32 %v1799, 7
      %v1801 = vsub.s32 %v1798, %v1800
      %v1802 = vrot.slane %v1788, %v1801
      %v1803 = vcombine.low %v1770, %v1786
      %v1804 = vcombine.high %v1770, %v1786
      %v1806 = vunpack.c.l.s4 1934713408
      %v1807 = vunpack.c.0.s8 %v1806
      %v1808 = vlaneseq
      %v1809 = vshrl.u32 %v1808, 7
      %v1810 = vsub.s32 %v1807, %v1809
      %v1811 = vrot.slane %v1803, %v1810
      %v1813 = vunpack.c.l.s4 1934713408
      %v1814 = vunpack.c.0.s8 %v1813
      %v1815 = vlaneseq
      %v1816 = vshrl.u32 %v1815, 7
      %v1817 = vsub.s32 %v1814, %v1816
      %v1818 = vrot.slane %v1804, %v1817
      %v1819 = vcombine.high %v1795, 0.0
      %v1820 = vcombine.high %v1802, 0.0
      %v1821 = vcombine.high %v1811, 0.0
      %v1822 = vcombine.high %v1818, 0.0
      %1824 = vrot.lane.b32.xlu0 %v1751, 16
      %v1825 = vpop.permute.xlu0 %1824
      %1828 = vrot.lane.b32.xlu0 %v1734, 32
      %v1829 = vpop.permute.xlu0 %1828
      %1832 = vrot.lane.b32.xlu0 %v1752, 48
      %v1833 = vpop.permute.xlu0 %1832
      %1836 = vrot.lane.b32.xlu0 %v1743, 64
      %v1837 = vpop.permute.xlu0 %1836
      %1840 = vrot.lane.b32.xlu0 %v1753, 80
      %v1841 = vpop.permute.xlu0 %1840
      %1844 = vrot.lane.b32.xlu0 %v1750, 96
      %v1845 = vpop.permute.xlu0 %1844
      %1848 = vrot.lane.b32.xlu0 %v1754, 112
      %v1849 = vpop.permute.xlu0 %1848
      %1852 = vrot.lane.b32.xlu0 %v1819, 16
      %v1853 = vpop.permute.xlu0 %1852
      %1856 = vrot.lane.b32.xlu0 %v1802, 32
      %v1857 = vpop.permute.xlu0 %1856
      %1860 = vrot.lane.b32.xlu0 %v1820, 48
      %v1861 = vpop.permute.xlu0 %1860
      %1864 = vrot.lane.b32.xlu0 %v1811, 64
      %v1865 = vpop.permute.xlu0 %1864
      %1868 = vrot.lane.b32.xlu0 %v1821, 80
      %v1869 = vpop.permute.xlu0 %1868
      %1872 = vrot.lane.b32.xlu0 %v1818, 96
      %v1873 = vpop.permute.xlu0 %1872
      %1876 = vrot.lane.b32.xlu0 %v1822, 112
      %v1877 = vpop.permute.xlu0 %1876
      %v1879 = vsel %vm430, %v1727, %v1825
      %v1880 = vsel %vm432, %v1879, %v1829
      %v1881 = vsel %vm434, %v1880, %v1833
      %v1882 = vsel %vm436, %v1881, %v1837
      %v1883 = vsel %vm438, %v1882, %v1841
      %v1884 = vsel %vm440, %v1883, %v1845
      %v1885 = vsel %vm442, %v1884, %v1849
      %v1886 = vsel %vm430, %v1795, %v1853
      %v1887 = vsel %vm432, %v1886, %v1857
      %v1888 = vsel %vm434, %v1887, %v1861
      %v1889 = vsel %vm436, %v1888, %v1865
      %v1890 = vsel %vm438, %v1889, %v1869
      %v1891 = vsel %vm440, %v1890, %v1873
      %v1892 = vsel %vm442, %v1891, %v1877
      %1893 = vst [vmem:[#allocation3 + $0x30] sm:$0xf] %v1885
      %1894 = vst [vmem:[#allocation3 + $0x38] sm:$0xf] %v1892
      %v1895 = vld [vmem:[#allocation2 + $0x2] sm:$0xff]
      %v1896 = vld [vmem:[#allocation2 + $0xa] sm:$0xff]
      %v1897 = vld [vmem:[#allocation2 + $0x1a] sm:$0xff]
      %v1898 = vld [vmem:[#allocation2 + $0x22] sm:$0xff]
      %v1899 = vld [vmem:[#allocation2 + $0x32] sm:$0xff]
      %v1900 = vld [vmem:[#allocation2 + $0x3a] sm:$0xff]
      %v1901 = vld [vmem:[#allocation2 + $0x4a] sm:$0xff]
      %v1902 = vld [vmem:[#allocation2 + $0x52] sm:$0xff]
      %1911 = vrot.lane.b32.xlu0 %v1895, 127
      %v1912 = vpop.permute.xlu0 %1911
      %1913 = vrot.lane.b32.xlu0 %v1896, 127
      %v1914 = vpop.permute.xlu0 %1913
      %1915 = vrot.lane.b32.xlu0 %v1897, 127
      %v1916 = vpop.permute.xlu0 %1915
      %1917 = vrot.lane.b32.xlu0 %v1898, 127
      %v1918 = vpop.permute.xlu0 %1917
      %1919 = vrot.lane.b32.xlu0 %v1899, 127
      %v1920 = vpop.permute.xlu0 %1919
      %1921 = vrot.lane.b32.xlu0 %v1900, 127
      %v1922 = vpop.permute.xlu0 %1921
      %1923 = vrot.lane.b32.xlu0 %v1901, 127
      %v1924 = vpop.permute.xlu0 %1923
      %1925 = vrot.lane.b32.xlu0 %v1902, 127
      %v1926 = vpop.permute.xlu0 %1925
      %v1935 = vcombine.low %v1912, %v1920
      %v1936 = vcombine.high %v1912, %v1920
      %v1938 = vunpack.c.l.s4 1983009808
      %v1939 = vunpack.c.0.s8 %v1938
      %v1940 = vlaneseq
      %v1941 = vshrl.u32 %v1940, 7
      %v1942 = vsub.s32 %v1939, %v1941
      %v1943 = vrot.slane %v1935, %v1942
      %v1945 = vunpack.c.l.s4 1983009808
      %v1946 = vunpack.c.0.s8 %v1945
      %v1947 = vlaneseq
      %v1948 = vshrl.u32 %v1947, 7
      %v1949 = vsub.s32 %v1946, %v1948
      %v1950 = vrot.slane %v1936, %v1949
      %v1951 = vcombine.low %v1916, %v1924
      %v1952 = vcombine.high %v1916, %v1924
      %v1954 = vunpack.c.l.s4 1983009808
      %v1955 = vunpack.c.0.s8 %v1954
      %v1956 = vlaneseq
      %v1957 = vshrl.u32 %v1956, 7
      %v1958 = vsub.s32 %v1955, %v1957
      %v1959 = vrot.slane %v1951, %v1958
      %v1961 = vunpack.c.l.s4 1983009808
      %v1962 = vunpack.c.0.s8 %v1961
      %v1963 = vlaneseq
      %v1964 = vshrl.u32 %v1963, 7
      %v1965 = vsub.s32 %v1962, %v1964
      %v1966 = vrot.slane %v1952, %v1965
      %v1967 = vcombine.low %v1943, %v1959
      %v1968 = vcombine.high %v1943, %v1959
      %v1970 = vunpack.c.l.s4 1934713408
      %v1971 = vunpack.c.0.s8 %v1970
      %v1972 = vlaneseq
      %v1973 = vshrl.u32 %v1972, 7
      %v1974 = vsub.s32 %v1971, %v1973
      %v1975 = vrot.slane %v1967, %v1974
      %v1977 = vunpack.c.l.s4 1934713408
      %v1978 = vunpack.c.0.s8 %v1977
      %v1979 = vlaneseq
      %v1980 = vshrl.u32 %v1979, 7
      %v1981 = vsub.s32 %v1978, %v1980
      %v1982 = vrot.slane %v1968, %v1981
      %v1983 = vcombine.low %v1950, %v1966
      %v1984 = vcombine.high %v1950, %v1966
      %v1986 = vunpack.c.l.s4 1934713408
      %v1987 = vunpack.c.0.s8 %v1986
      %v1988 = vlaneseq
      %v1989 = vshrl.u32 %v1988, 7
      %v1990 = vsub.s32 %v1987, %v1989
      %v1991 = vrot.slane %v1983, %v1990
      %v1993 = vunpack.c.l.s4 1934713408
      %v1994 = vunpack.c.0.s8 %v1993
      %v1995 = vlaneseq
      %v1996 = vshrl.u32 %v1995, 7
      %v1997 = vsub.s32 %v1994, %v1996
      %v1998 = vrot.slane %v1984, %v1997
      %v1999 = vcombine.high %v1975, 0.0
      %v2000 = vcombine.high %v1982, 0.0
      %v2001 = vcombine.high %v1991, 0.0
      %v2002 = vcombine.high %v1998, 0.0
      %v2003 = vcombine.low %v1914, %v1922
      %v2004 = vcombine.high %v1914, %v1922
      %v2006 = vunpack.c.l.s4 1983009808
      %v2007 = vunpack.c.0.s8 %v2006
      %v2008 = vlaneseq
      %v2009 = vshrl.u32 %v2008, 7
      %v2010 = vsub.s32 %v2007, %v2009
      %v2011 = vrot.slane %v2003, %v2010
      %v2013 = vunpack.c.l.s4 1983009808
      %v2014 = vunpack.c.0.s8 %v2013
      %v2015 = vlaneseq
      %v2016 = vshrl.u32 %v2015, 7
      %v2017 = vsub.s32 %v2014, %v2016
      %v2018 = vrot.slane %v2004, %v2017
      %v2019 = vcombine.low %v1918, %v1926
      %v2020 = vcombine.high %v1918, %v1926
      %v2022 = vunpack.c.l.s4 1983009808
      %v2023 = vunpack.c.0.s8 %v2022
      %v2024 = vlaneseq
      %v2025 = vshrl.u32 %v2024, 7
      %v2026 = vsub.s32 %v2023, %v2025
      %v2027 = vrot.slane %v2019, %v2026
      %v2029 = vunpack.c.l.s4 1983009808
      %v2030 = vunpack.c.0.s8 %v2029
      %v2031 = vlaneseq
      %v2032 = vshrl.u32 %v2031, 7
      %v2033 = vsub.s32 %v2030, %v2032
      %v2034 = vrot.slane %v2020, %v2033
      %v2035 = vcombine.low %v2011, %v2027
      %v2036 = vcombine.high %v2011, %v2027
      %v2038 = vunpack.c.l.s4 1934713408
      %v2039 = vunpack.c.0.s8 %v2038
      %v2040 = vlaneseq
      %v2041 = vshrl.u32 %v2040, 7
      %v2042 = vsub.s32 %v2039, %v2041
      %v2043 = vrot.slane %v2035, %v2042
      %v2045 = vunpack.c.l.s4 1934713408
      %v2046 = vunpack.c.0.s8 %v2045
      %v2047 = vlaneseq
      %v2048 = vshrl.u32 %v2047, 7
      %v2049 = vsub.s32 %v2046, %v2048
      %v2050 = vrot.slane %v2036, %v2049
      %v2051 = vcombine.low %v2018, %v2034
      %v2052 = vcombine.high %v2018, %v2034
      %v2054 = vunpack.c.l.s4 1934713408
      %v2055 = vunpack.c.0.s8 %v2054
      %v2056 = vlaneseq
      %v2057 = vshrl.u32 %v2056, 7
      %v2058 = vsub.s32 %v2055, %v2057
      %v2059 = vrot.slane %v2051, %v2058
      %v2061 = vunpack.c.l.s4 1934713408
      %v2062 = vunpack.c.0.s8 %v2061
      %v2063 = vlaneseq
      %v2064 = vshrl.u32 %v2063, 7
      %v2065 = vsub.s32 %v2062, %v2064
      %v2066 = vrot.slane %v2052, %v2065
      %v2067 = vcombine.high %v2043, 0.0
      %v2068 = vcombine.high %v2050, 0.0
      %v2069 = vcombine.high %v2059, 0.0
      %v2070 = vcombine.high %v2066, 0.0
      %2072 = vrot.lane.b32.xlu0 %v1999, 16
      %v2073 = vpop.permute.xlu0 %2072
      %2076 = vrot.lane.b32.xlu0 %v1982, 32
      %v2077 = vpop.permute.xlu0 %2076
      %2080 = vrot.lane.b32.xlu0 %v2000, 48
      %v2081 = vpop.permute.xlu0 %2080
      %2084 = vrot.lane.b32.xlu0 %v1991, 64
      %v2085 = vpop.permute.xlu0 %2084
      %2088 = vrot.lane.b32.xlu0 %v2001, 80
      %v2089 = vpop.permute.xlu0 %2088
      %2092 = vrot.lane.b32.xlu0 %v1998, 96
      %v2093 = vpop.permute.xlu0 %2092
      %2096 = vrot.lane.b32.xlu0 %v2002, 112
      %v2097 = vpop.permute.xlu0 %2096
      %2100 = vrot.lane.b32.xlu0 %v2067, 16
      %v2101 = vpop.permute.xlu0 %2100
      %2104 = vrot.lane.b32.xlu0 %v2050, 32
      %v2105 = vpop.permute.xlu0 %2104
      %2108 = vrot.lane.b32.xlu0 %v2068, 48
      %v2109 = vpop.permute.xlu0 %2108
      %2112 = vrot.lane.b32.xlu0 %v2059, 64
      %v2113 = vpop.permute.xlu0 %2112
      %2116 = vrot.lane.b32.xlu0 %v2069, 80
      %v2117 = vpop.permute.xlu0 %2116
      %2120 = vrot.lane.b32.xlu0 %v2066, 96
      %v2121 = vpop.permute.xlu0 %2120
      %2124 = vrot.lane.b32.xlu0 %v2070, 112
      %v2125 = vpop.permute.xlu0 %2124
      %v2127 = vsel %vm430, %v1975, %v2073
      %v2128 = vsel %vm432, %v2127, %v2077
      %v2129 = vsel %vm434, %v2128, %v2081
      %v2130 = vsel %vm436, %v2129, %v2085
      %v2131 = vsel %vm438, %v2130, %v2089
      %v2132 = vsel %vm440, %v2131, %v2093
      %v2133 = vsel %vm442, %v2132, %v2097
      %v2134 = vsel %vm430, %v2043, %v2101
      %v2135 = vsel %vm432, %v2134, %v2105
      %v2136 = vsel %vm434, %v2135, %v2109
      %v2137 = vsel %vm436, %v2136, %v2113
      %v2138 = vsel %vm438, %v2137, %v2117
      %v2139 = vsel %vm440, %v2138, %v2121
      %v2140 = vsel %vm442, %v2139, %v2125
      %v2143 = vrot.slane %v2133, 4
      %v2144 = vrot.slane %v2140, 4
      %2147 = vst [vmem:[#allocation3 + $0x30] sm:$0xf0] %v2143
      %2148 = vst [vmem:[#allocation3 + $0x38] sm:$0xf0] %v2144
      %v2149 = vld [vmem:[#allocation2 + $0x2] sm:$0xff]
      %v2150 = vld [vmem:[#allocation2 + $0xa] sm:$0xff]
      %v2151 = vld [vmem:[#allocation2 + $0x1a] sm:$0xff]
      %v2152 = vld [vmem:[#allocation2 + $0x22] sm:$0xff]
      %v2153 = vld [vmem:[#allocation2 + $0x32] sm:$0xff]
      %v2154 = vld [vmem:[#allocation2 + $0x3a] sm:$0xff]
      %v2155 = vld [vmem:[#allocation2 + $0x4a] sm:$0xff]
      %v2156 = vld [vmem:[#allocation2 + $0x52] sm:$0xff]
      %2165 = vrot.lane.b32.xlu0 %v2149, 126
      %v2166 = vpop.permute.xlu0 %2165
      %2167 = vrot.lane.b32.xlu0 %v2150, 126
      %v2168 = vpop.permute.xlu0 %2167
      %2169 = vrot.lane.b32.xlu0 %v2151, 126
      %v2170 = vpop.permute.xlu0 %2169
      %2171 = vrot.lane.b32.xlu0 %v2152, 126
      %v2172 = vpop.permute.xlu0 %2171
      %2173 = vrot.lane.b32.xlu0 %v2153, 126
      %v2174 = vpop.permute.xlu0 %2173
      %2175 = vrot.lane.b32.xlu0 %v2154, 126
      %v2176 = vpop.permute.xlu0 %2175
      %2177 = vrot.lane.b32.xlu0 %v2155, 126
      %v2178 = vpop.permute.xlu0 %2177
      %2179 = vrot.lane.b32.xlu0 %v2156, 126
      %v2180 = vpop.permute.xlu0 %2179
      %v2189 = vcombine.low %v2166, %v2174
      %v2190 = vcombine.high %v2166, %v2174
      %v2192 = vunpack.c.l.s4 1983009808
      %v2193 = vunpack.c.0.s8 %v2192
      %v2194 = vlaneseq
      %v2195 = vshrl.u32 %v2194, 7
      %v2196 = vsub.s32 %v2193, %v2195
      %v2197 = vrot.slane %v2189, %v2196
      %v2199 = vunpack.c.l.s4 1983009808
      %v2200 = vunpack.c.0.s8 %v2199
      %v2201 = vlaneseq
      %v2202 = vshrl.u32 %v2201, 7
      %v2203 = vsub.s32 %v2200, %v2202
      %v2204 = vrot.slane %v2190, %v2203
      %v2205 = vcombine.low %v2170, %v2178
      %v2206 = vcombine.high %v2170, %v2178
      %v2208 = vunpack.c.l.s4 1983009808
      %v2209 = vunpack.c.0.s8 %v2208
      %v2210 = vlaneseq
      %v2211 = vshrl.u32 %v2210, 7
      %v2212 = vsub.s32 %v2209, %v2211
      %v2213 = vrot.slane %v2205, %v2212
      %v2215 = vunpack.c.l.s4 1983009808
      %v2216 = vunpack.c.0.s8 %v2215
      %v2217 = vlaneseq
      %v2218 = vshrl.u32 %v2217, 7
      %v2219 = vsub.s32 %v2216, %v2218
      %v2220 = vrot.slane %v2206, %v2219
      %v2221 = vcombine.low %v2197, %v2213
      %v2222 = vcombine.high %v2197, %v2213
      %v2224 = vunpack.c.l.s4 1934713408
      %v2225 = vunpack.c.0.s8 %v2224
      %v2226 = vlaneseq
      %v2227 = vshrl.u32 %v2226, 7
      %v2228 = vsub.s32 %v2225, %v2227
      %v2229 = vrot.slane %v2221, %v2228
      %v2231 = vunpack.c.l.s4 1934713408
      %v2232 = vunpack.c.0.s8 %v2231
      %v2233 = vlaneseq
      %v2234 = vshrl.u32 %v2233, 7
      %v2235 = vsub.s32 %v2232, %v2234
      %v2236 = vrot.slane %v2222, %v2235
      %v2237 = vcombine.low %v2204, %v2220
      %v2238 = vcombine.high %v2204, %v2220
      %v2240 = vunpack.c.l.s4 1934713408
      %v2241 = vunpack.c.0.s8 %v2240
      %v2242 = vlaneseq
      %v2243 = vshrl.u32 %v2242, 7
      %v2244 = vsub.s32 %v2241, %v2243
      %v2245 = vrot.slane %v2237, %v2244
      %v2247 = vunpack.c.l.s4 1934713408
      %v2248 = vunpack.c.0.s8 %v2247
      %v2249 = vlaneseq
      %v2250 = vshrl.u32 %v2249, 7
      %v2251 = vsub.s32 %v2248, %v2250
      %v2252 = vrot.slane %v2238, %v2251
      %v2253 = vcombine.high %v2229, 0.0
      %v2254 = vcombine.high %v2236, 0.0
      %v2255 = vcombine.high %v2245, 0.0
      %v2256 = vcombine.high %v2252, 0.0
      %v2257 = vcombine.low %v2168, %v2176
      %v2258 = vcombine.high %v2168, %v2176
      %v2260 = vunpack.c.l.s4 1983009808
      %v2261 = vunpack.c.0.s8 %v2260
      %v2262 = vlaneseq
      %v2263 = vshrl.u32 %v2262, 7
      %v2264 = vsub.s32 %v2261, %v2263
      %v2265 = vrot.slane %v2257, %v2264
      %v2267 = vunpack.c.l.s4 1983009808
      %v2268 = vunpack.c.0.s8 %v2267
      %v2269 = vlaneseq
      %v2270 = vshrl.u32 %v2269, 7
      %v2271 = vsub.s32 %v2268, %v2270
      %v2272 = vrot.slane %v2258, %v2271
      %v2273 = vcombine.low %v2172, %v2180
      %v2274 = vcombine.high %v2172, %v2180
      %v2276 = vunpack.c.l.s4 1983009808
      %v2277 = vunpack.c.0.s8 %v2276
      %v2278 = vlaneseq
      %v2279 = vshrl.u32 %v2278, 7
      %v2280 = vsub.s32 %v2277, %v2279
      %v2281 = vrot.slane %v2273, %v2280
      %v2283 = vunpack.c.l.s4 1983009808
      %v2284 = vunpack.c.0.s8 %v2283
      %v2285 = vlaneseq
      %v2286 = vshrl.u32 %v2285, 7
      %v2287 = vsub.s32 %v2284, %v2286
      %v2288 = vrot.slane %v2274, %v2287
      %v2289 = vcombine.low %v2265, %v2281
      %v2290 = vcombine.high %v2265, %v2281
      %v2292 = vunpack.c.l.s4 1934713408
      %v2293 = vunpack.c.0.s8 %v2292
      %v2294 = vlaneseq
      %v2295 = vshrl.u32 %v2294, 7
      %v2296 = vsub.s32 %v2293, %v2295
      %v2297 = vrot.slane %v2289, %v2296
      %v2299 = vunpack.c.l.s4 1934713408
      %v2300 = vunpack.c.0.s8 %v2299
      %v2301 = vlaneseq
      %v2302 = vshrl.u32 %v2301, 7
      %v2303 = vsub.s32 %v2300, %v2302
      %v2304 = vrot.slane %v2290, %v2303
      %v2305 = vcombine.low %v2272, %v2288
      %v2306 = vcombine.high %v2272, %v2288
      %v2308 = vunpack.c.l.s4 1934713408
      %v2309 = vunpack.c.0.s8 %v2308
      %v2310 = vlaneseq
      %v2311 = vshrl.u32 %v2310, 7
      %v2312 = vsub.s32 %v2309, %v2311
      %v2313 = vrot.slane %v2305, %v2312
      %v2315 = vunpack.c.l.s4 1934713408
      %v2316 = vunpack.c.0.s8 %v2315
      %v2317 = vlaneseq
      %v2318 = vshrl.u32 %v2317, 7
      %v2319 = vsub.s32 %v2316, %v2318
      %v2320 = vrot.slane %v2306, %v2319
      %v2321 = vcombine.high %v2297, 0.0
      %v2322 = vcombine.high %v2304, 0.0
      %v2323 = vcombine.high %v2313, 0.0
      %v2324 = vcombine.high %v2320, 0.0
      %2326 = vrot.lane.b32.xlu0 %v2253, 16
      %v2327 = vpop.permute.xlu0 %2326
      %2330 = vrot.lane.b32.xlu0 %v2236, 32
      %v2331 = vpop.permute.xlu0 %2330
      %2334 = vrot.lane.b32.xlu0 %v2254, 48
      %v2335 = vpop.permute.xlu0 %2334
      %2338 = vrot.lane.b32.xlu0 %v2245, 64
      %v2339 = vpop.permute.xlu0 %2338
      %2342 = vrot.lane.b32.xlu0 %v2255, 80
      %v2343 = vpop.permute.xlu0 %2342
      %2346 = vrot.lane.b32.xlu0 %v2252, 96
      %v2347 = vpop.permute.xlu0 %2346
      %2350 = vrot.lane.b32.xlu0 %v2256, 112
      %v2351 = vpop.permute.xlu0 %2350
      %2354 = vrot.lane.b32.xlu0 %v2321, 16
      %v2355 = vpop.permute.xlu0 %2354
      %2358 = vrot.lane.b32.xlu0 %v2304, 32
      %v2359 = vpop.permute.xlu0 %2358
      %2362 = vrot.lane.b32.xlu0 %v2322, 48
      %v2363 = vpop.permute.xlu0 %2362
      %2366 = vrot.lane.b32.xlu0 %v2313, 64
      %v2367 = vpop.permute.xlu0 %2366
      %2370 = vrot.lane.b32.xlu0 %v2323, 80
      %v2371 = vpop.permute.xlu0 %2370
      %2374 = vrot.lane.b32.xlu0 %v2320, 96
      %v2375 = vpop.permute.xlu0 %2374
      %2378 = vrot.lane.b32.xlu0 %v2324, 112
      %v2379 = vpop.permute.xlu0 %2378
      %v2381 = vsel %vm430, %v2229, %v2327
      %v2382 = vsel %vm432, %v2381, %v2331
      %v2383 = vsel %vm434, %v2382, %v2335
      %v2384 = vsel %vm436, %v2383, %v2339
      %v2385 = vsel %vm438, %v2384, %v2343
      %v2386 = vsel %vm440, %v2385, %v2347
      %v2387 = vsel %vm442, %v2386, %v2351
      %v2388 = vsel %vm430, %v2297, %v2355
      %v2389 = vsel %vm432, %v2388, %v2359
      %v2390 = vsel %vm434, %v2389, %v2363
      %v2391 = vsel %vm436, %v2390, %v2367
      %v2392 = vsel %vm438, %v2391, %v2371
      %v2393 = vsel %vm440, %v2392, %v2375
      %v2394 = vsel %vm442, %v2393, %v2379
      %2395 = vst [vmem:[#allocation3 + $0x40] sm:$0xf] %v2387
      %2396 = vst [vmem:[#allocation3 + $0x48] sm:$0xf] %v2394
      %v2397 = vld [vmem:[%s1] sm:$0xff]
      %v2398 = vld [vmem:[#allocation3] sm:$0xff]
      %v2399 = vld [vmem:[#allocation3 + $0x8] sm:$0xff]
      %v2400 = vld [vmem:[#allocation3 + $0x10] sm:$0xf0]
      %v2401 = vld [vmem:[#allocation3 + $0x18] sm:$0xf0]
      %v2402 = vld [vmem:[#allocation3 + $0x20] sm:$0xf]
      %v2403 = vld [vmem:[#allocation3 + $0x28] sm:$0xf]
      %2405 = vrot.lane.b32.xlu0 %v2397, 120
      %v2406 = vpop.permute.xlu0 %2405
      %vm2411 = vcmask 1043456
      %v2412 = vrot.slane %v2400, 4
      %v2413 = vrot.slane %v2402, 4
      %v2414 = vsel %vm2411, %v2412, %v2413
      %v2415 = vrot.slane %v2401, 4
      %v2416 = vrot.slane %v2403, 4
      %v2417 = vsel %vm2411, %v2415, %v2416
      %vm2420 = vcmask 64512
      %v2421 = vsel %vm2420, %v2406, 0
      %2423 = vmatprep.subr.mxu0 %v2417
      %2424 = vmatpush1.msra.mxu0 %v2414
      %2425 = vmatprep.subr.mxu0 0.0
      %2426 = vmatpush1.msra.mxu0 0.0
      %2427 = vmatprep.subr.mxu0 0.0
      %2428 = vmatpush1.msra.mxu0 0.0
      %2429 = vmatprep.subr.mxu0 0.0
      %2430 = vmatpush1.msra.mxu0 0.0
      %2431 = vmatprep.subr.mxu0 0.0
      %2432 = vmatpush1.msra.mxu0 0.0
      %2433 = vmatprep.subr.mxu0 0.0
      %2434 = vmatpush1.msra.mxu0 0.0
      %2435 = vmatprep.subr.mxu0 0.0
      %2436 = vmatpush1.msra.mxu0 0.0
      %2437 = vmatprep.subr.mxu0 0.0
      %2438 = vmatpush1.msra.mxu0 0.0
      %2439 = vmatprep.subr.mxu0 0.0
      %2440 = vmatpush1.msra.mxu0 0.0
      %2441 = vmatprep.subr.mxu0 0.0
      %2442 = vmatpush1.msra.mxu0 0.0
      %2443 = vmatprep.subr.mxu0 0.0
      %2444 = vmatpush1.msra.mxu0 0.0
      %2445 = vmatprep.subr.mxu0 0.0
      %2446 = vmatpush1.msra.mxu0 0.0
      %2447 = vmatprep.subr.mxu0 0.0
      %2448 = vmatpush1.msra.mxu0 0.0
      %2449 = vmatprep.subr.mxu0 0.0
      %2450 = vmatpush1.msra.mxu0 0.0
      %2451 = vmatprep.subr.mxu0 0.0
      %2452 = vmatpush1.msra.mxu0 0.0
      %2453 = vmatprep.subr.mxu0 0.0
      %2454 = vmatpush1.msra.mxu0 0.0
      %2455 = vmatprep.subr.mxu0 0.0
      %2456 = vmatpush1.msra.mxu0 0.0
      %2457 = vmatprep.subr.mxu0 0.0
      %2458 = vmatpush1.msra.mxu0 0.0
      %2459 = vmatprep.subr.mxu0 0.0
      %2460 = vmatpush1.msra.mxu0 0.0
      %2461 = vmatprep.subr.mxu0 0.0
      %2462 = vmatpush1.msra.mxu0 0.0
      %2463 = vmatprep.subr.mxu0 0.0
      %2464 = vmatpush1.msra.mxu0 0.0
      %2465 = vmatprep.subr.mxu0 0.0
      %2466 = vmatpush1.msra.mxu0 0.0
      %2467 = vmatprep.subr.mxu0 0.0
      %2468 = vmatpush1.msra.mxu0 0.0
      %2469 = vmatprep.subr.mxu0 0.0
      %2470 = vmatpush1.msra.mxu0 0.0
      %2471 = vmatprep.subr.mxu0 0.0
      %2472 = vmatpush1.msra.mxu0 0.0
      %2473 = vmatprep.subr.mxu0 0.0
      %2474 = vmatpush1.msra.mxu0 0.0
      %2475 = vmatprep.subr.mxu0 0.0
      %2476 = vmatpush1.msra.mxu0 0.0
      %2477 = vmatprep.subr.mxu0 0.0
      %2478 = vmatpush1.msra.mxu0 0.0
      %2479 = vmatprep.subr.mxu0 0.0
      %2480 = vmatpush1.msra.mxu0 0.0
      %2481 = vmatprep.subr.mxu0 0.0
      %2482 = vmatpush1.msra.mxu0 0.0
      %2483 = vmatprep.subr.mxu0 0.0
      %2484 = vmatpush1.msra.mxu0 0.0
      %2485 = vmatprep.subr.mxu0 0.0
      %2486 = vmatpush1.msra.mxu0 0.0
      %2487 = vmatprep.mubr.f32.mxu0 0.0
      %2488 = vmatmul.mubr.f32.gmra.mrb[0].mxu0 %v2421
      %v2489 = vpop.f32.mrb[0].mxu0
      %v2490 = vadd.f32 0.0, %v2489
      %v2491 = vpop.f32.mrb[0].mxu0
      %v2492 = vadd.f32 0.0, %v2491
      %2493 = vdwg.mxu0
      %v2494 = vsel %vm2420, %v2397, 0
      %2496 = vmatprep.subr.mxu0 %v2399
      %2497 = vmatpush1.msra.mxu0 %v2398
      %2498 = vmatprep.subr.mxu0 0.0
      %2499 = vmatpush1.msra.mxu0 0.0
      %2500 = vmatprep.subr.mxu0 0.0
      %2501 = vmatpush1.msra.mxu0 0.0
      %2502 = vmatprep.subr.mxu0 0.0
      %2503 = vmatpush1.msra.mxu0 0.0
      %2504 = vmatprep.subr.mxu0 0.0
      %2505 = vmatpush1.msra.mxu0 0.0
      %2506 = vmatprep.subr.mxu0 0.0
      %2507 = vmatpush1.msra.mxu0 0.0
      %2508 = vmatprep.subr.mxu0 0.0
      %2509 = vmatpush1.msra.mxu0 0.0
      %2510 = vmatprep.subr.mxu0 0.0
      %2511 = vmatpush1.msra.mxu0 0.0
      %2512 = vmatprep.subr.mxu0 0.0
      %2513 = vmatpush1.msra.mxu0 0.0
      %2514 = vmatprep.subr.mxu0 0.0
      %2515 = vmatpush1.msra.mxu0 0.0
      %2516 = vmatprep.subr.mxu0 0.0
      %2517 = vmatpush1.msra.mxu0 0.0
      %2518 = vmatprep.subr.mxu0 0.0
      %2519 = vmatpush1.msra.mxu0 0.0
      %2520 = vmatprep.subr.mxu0 0.0
      %2521 = vmatpush1.msra.mxu0 0.0
      %2522 = vmatprep.subr.mxu0 0.0
      %2523 = vmatpush1.msra.mxu0 0.0
      %2524 = vmatprep.subr.mxu0 0.0
      %2525 = vmatpush1.msra.mxu0 0.0
      %2526 = vmatprep.subr.mxu0 0.0
      %2527 = vmatpush1.msra.mxu0 0.0
      %2528 = vmatprep.subr.mxu0 0.0
      %2529 = vmatpush1.msra.mxu0 0.0
      %2530 = vmatprep.subr.mxu0 0.0
      %2531 = vmatpush1.msra.mxu0 0.0
      %2532 = vmatprep.subr.mxu0 0.0
      %2533 = vmatpush1.msra.mxu0 0.0
      %2534 = vmatprep.subr.mxu0 0.0
      %2535 = vmatpush1.msra.mxu0 0.0
      %2536 = vmatprep.subr.mxu0 0.0
      %2537 = vmatpush1.msra.mxu0 0.0
      %2538 = vmatprep.subr.mxu0 0.0
      %2539 = vmatpush1.msra.mxu0 0.0
      %2540 = vmatprep.subr.mxu0 0.0
      %2541 = vmatpush1.msra.mxu0 0.0
      %2542 = vmatprep.subr.mxu0 0.0
      %2543 = vmatpush1.msra.mxu0 0.0
      %2544 = vmatprep.subr.mxu0 0.0
      %2545 = vmatpush1.msra.mxu0 0.0
      %2546 = vmatprep.subr.mxu0 0.0
      %2547 = vmatpush1.msra.mxu0 0.0
      %2548 = vmatprep.subr.mxu0 0.0
      %2549 = vmatpush1.msra.mxu0 0.0
      %2550 = vmatprep.subr.mxu0 0.0
      %2551 = vmatpush1.msra.mxu0 0.0
      %2552 = vmatprep.subr.mxu0 0.0
      %2553 = vmatpush1.msra.mxu0 0.0
      %2554 = vmatprep.subr.mxu0 0.0
      %2555 = vmatpush1.msra.mxu0 0.0
      %2556 = vmatprep.subr.mxu0 0.0
      %2557 = vmatpush1.msra.mxu0 0.0
      %2558 = vmatprep.subr.mxu0 0.0
      %2559 = vmatpush1.msra.mxu0 0.0
      %2560 = vmatprep.mubr.f32.mxu0 0.0
      %2561 = vmatmul.mubr.f32.gmra.mrb[0].mxu0 %v2494
      %v2562 = vpop.f32.mrb[0].mxu0
      %v2563 = vadd.f32 %v2490, %v2562
      %v2564 = vpop.f32.mrb[0].mxu0
      %v2565 = vadd.f32 %v2492, %v2564
      %2566 = vdwg.mxu0
      %2567 = vst [vmem:[#allocation4] sm:$0xff] %v2563
      %2568 = vst [vmem:[#allocation4 + $0x8] sm:$0xff] %v2565
      %v2569 = vadd.f32 %v2563, %v2565
      %2570 = vadd.xlane.f32.xlu0 %v2569
      %v2571 = vpop.xlane.xlu0 %2570
      %v2572 = vadd.f32 %v2571, 0.0
      %v2573 = vmul.f32 %v2563, %v2563
      %v2574 = vmul.f32 %v2565, %v2565
      %v2575 = vadd.f32 %v2573, %v2574
      %2576 = vadd.xlane.f32.xlu0 %v2575
      %v2577 = vpop.xlane.xlu0 %2576
      %v2578 = vadd.f32 %v2577, 0.0
      %s2579 = scalar_lea.vmem %s1, 8
      %v2580 = vld [vmem:[%s2579] sm:$0xff]
      %v2581 = vld [vmem:[#allocation3] sm:$0xf0]
      %v2582 = vld [vmem:[#allocation3 + $0x8] sm:$0xf0]
      %v2583 = vld [vmem:[#allocation3 + $0x10] sm:$0xf]
      %v2584 = vld [vmem:[#allocation3 + $0x18] sm:$0xf]
      %v2585 = vld [vmem:[#allocation3 + $0x20] sm:$0xff]
      %v2586 = vld [vmem:[#allocation3 + $0x28] sm:$0xff]
      %2588 = vrot.lane.b32.xlu0 %v2580, 120
      %v2589 = vpop.permute.xlu0 %2588
      %v2590 = vsel %vm2420, %v2589, 0
      %2592 = vmatprep.subr.mxu0 %v2586
      %2593 = vmatpush1.msra.mxu0 %v2585
      %2594 = vmatprep.subr.mxu0 0.0
      %2595 = vmatpush1.msra.mxu0 0.0
      %2596 = vmatprep.subr.mxu0 0.0
      %2597 = vmatpush1.msra.mxu0 0.0
      %2598 = vmatprep.subr.mxu0 0.0
      %2599 = vmatpush1.msra.mxu0 0.0
      %2600 = vmatprep.subr.mxu0 0.0
      %2601 = vmatpush1.msra.mxu0 0.0
      %2602 = vmatprep.subr.mxu0 0.0
      %2603 = vmatpush1.msra.mxu0 0.0
      %2604 = vmatprep.subr.mxu0 0.0
      %2605 = vmatpush1.msra.mxu0 0.0
      %2606 = vmatprep.subr.mxu0 0.0
      %2607 = vmatpush1.msra.mxu0 0.0
      %2608 = vmatprep.subr.mxu0 0.0
      %2609 = vmatpush1.msra.mxu0 0.0
      %2610 = vmatprep.subr.mxu0 0.0
      %2611 = vmatpush1.msra.mxu0 0.0
      %2612 = vmatprep.subr.mxu0 0.0
      %2613 = vmatpush1.msra.mxu0 0.0
      %2614 = vmatprep.subr.mxu0 0.0
      %2615 = vmatpush1.msra.mxu0 0.0
      %2616 = vmatprep.subr.mxu0 0.0
      %2617 = vmatpush1.msra.mxu0 0.0
      %2618 = vmatprep.subr.mxu0 0.0
      %2619 = vmatpush1.msra.mxu0 0.0
      %2620 = vmatprep.subr.mxu0 0.0
      %2621 = vmatpush1.msra.mxu0 0.0
      %2622 = vmatprep.subr.mxu0 0.0
      %2623 = vmatpush1.msra.mxu0 0.0
      %2624 = vmatprep.subr.mxu0 0.0
      %2625 = vmatpush1.msra.mxu0 0.0
      %2626 = vmatprep.subr.mxu0 0.0
      %2627 = vmatpush1.msra.mxu0 0.0
      %2628 = vmatprep.subr.mxu0 0.0
      %2629 = vmatpush1.msra.mxu0 0.0
      %2630 = vmatprep.subr.mxu0 0.0
      %2631 = vmatpush1.msra.mxu0 0.0
      %2632 = vmatprep.subr.mxu0 0.0
      %2633 = vmatpush1.msra.mxu0 0.0
      %2634 = vmatprep.subr.mxu0 0.0
      %2635 = vmatpush1.msra.mxu0 0.0
      %2636 = vmatprep.subr.mxu0 0.0
      %2637 = vmatpush1.msra.mxu0 0.0
      %2638 = vmatprep.subr.mxu0 0.0
      %2639 = vmatpush1.msra.mxu0 0.0
      %2640 = vmatprep.subr.mxu0 0.0
      %2641 = vmatpush1.msra.mxu0 0.0
      %2642 = vmatprep.subr.mxu0 0.0
      %2643 = vmatpush1.msra.mxu0 0.0
      %2644 = vmatprep.subr.mxu0 0.0
      %2645 = vmatpush1.msra.mxu0 0.0
      %2646 = vmatprep.subr.mxu0 0.0
      %2647 = vmatpush1.msra.mxu0 0.0
      %2648 = vmatprep.subr.mxu0 0.0
      %2649 = vmatpush1.msra.mxu0 0.0
      %2650 = vmatprep.subr.mxu0 0.0
      %2651 = vmatpush1.msra.mxu0 0.0
      %2652 = vmatprep.subr.mxu0 0.0
      %2653 = vmatpush1.msra.mxu0 0.0
      %2654 = vmatprep.subr.mxu0 0.0
      %2655 = vmatpush1.msra.mxu0 0.0
      %2656 = vmatprep.mubr.f32.mxu0 0.0
      %2657 = vmatmul.mubr.f32.gmra.mrb[0].mxu0 %v2590
      %v2658 = vpop.f32.mrb[0].mxu0
      %v2659 = vadd.f32 0.0, %v2658
      %v2660 = vpop.f32.mrb[0].mxu0
      %v2661 = vadd.f32 0.0, %v2660
      %2662 = vdwg.mxu0
      %v2667 = vrot.slane %v2581, 4
      %v2668 = vrot.slane %v2583, 4
      %v2669 = vsel %vm2411, %v2667, %v2668
      %v2670 = vrot.slane %v2582, 4
      %v2671 = vrot.slane %v2584, 4
      %v2672 = vsel %vm2411, %v2670, %v2671
      %v2675 = vsel %vm2420, %v2580, 0
      %2677 = vmatprep.subr.mxu0 %v2672
      %2678 = vmatpush1.msra.mxu0 %v2669
      %2679 = vmatprep.subr.mxu0 0.0
      %2680 = vmatpush1.msra.mxu0 0.0
      %2681 = vmatprep.subr.mxu0 0.0
      %2682 = vmatpush1.msra.mxu0 0.0
      %2683 = vmatprep.subr.mxu0 0.0
      %2684 = vmatpush1.msra.mxu0 0.0
      %2685 = vmatprep.subr.mxu0 0.0
      %2686 = vmatpush1.msra.mxu0 0.0
      %2687 = vmatprep.subr.mxu0 0.0
      %2688 = vmatpush1.msra.mxu0 0.0
      %2689 = vmatprep.subr.mxu0 0.0
      %2690 = vmatpush1.msra.mxu0 0.0
      %2691 = vmatprep.subr.mxu0 0.0
      %2692 = vmatpush1.msra.mxu0 0.0
      %2693 = vmatprep.subr.mxu0 0.0
      %2694 = vmatpush1.msra.mxu0 0.0
      %2695 = vmatprep.subr.mxu0 0.0
      %2696 = vmatpush1.msra.mxu0 0.0
      %2697 = vmatprep.subr.mxu0 0.0
      %2698 = vmatpush1.msra.mxu0 0.0
      %2699 = vmatprep.subr.mxu0 0.0
      %2700 = vmatpush1.msra.mxu0 0.0
      %2701 = vmatprep.subr.mxu0 0.0
      %2702 = vmatpush1.msra.mxu0 0.0
      %2703 = vmatprep.subr.mxu0 0.0
      %2704 = vmatpush1.msra.mxu0 0.0
      %2705 = vmatprep.subr.mxu0 0.0
      %2706 = vmatpush1.msra.mxu0 0.0
      %2707 = vmatprep.subr.mxu0 0.0
      %2708 = vmatpush1.msra.mxu0 0.0
      %2709 = vmatprep.subr.mxu0 0.0
      %2710 = vmatpush1.msra.mxu0 0.0
      %2711 = vmatprep.subr.mxu0 0.0
      %2712 = vmatpush1.msra.mxu0 0.0
      %2713 = vmatprep.subr.mxu0 0.0
      %2714 = vmatpush1.msra.mxu0 0.0
      %2715 = vmatprep.subr.mxu0 0.0
      %2716 = vmatpush1.msra.mxu0 0.0
      %2717 = vmatprep.subr.mxu0 0.0
      %2718 = vmatpush1.msra.mxu0 0.0
      %2719 = vmatprep.subr.mxu0 0.0
      %2720 = vmatpush1.msra.mxu0 0.0
      %2721 = vmatprep.subr.mxu0 0.0
      %2722 = vmatpush1.msra.mxu0 0.0
      %2723 = vmatprep.subr.mxu0 0.0
      %2724 = vmatpush1.msra.mxu0 0.0
      %2725 = vmatprep.subr.mxu0 0.0
      %2726 = vmatpush1.msra.mxu0 0.0
      %2727 = vmatprep.subr.mxu0 0.0
      %2728 = vmatpush1.msra.mxu0 0.0
      %2729 = vmatprep.subr.mxu0 0.0
      %2730 = vmatpush1.msra.mxu0 0.0
      %2731 = vmatprep.subr.mxu0 0.0
      %2732 = vmatpush1.msra.mxu0 0.0
      %2733 = vmatprep.subr.mxu0 0.0
      %2734 = vmatpush1.msra.mxu0 0.0
      %2735 = vmatprep.subr.mxu0 0.0
      %2736 = vmatpush1.msra.mxu0 0.0
      %2737 = vmatprep.subr.mxu0 0.0
      %2738 = vmatpush1.msra.mxu0 0.0
      %2739 = vmatprep.subr.mxu0 0.0
      %2740 = vmatpush1.msra.mxu0 0.0
      %2741 = vmatprep.mubr.f32.mxu0 0.0
      %2742 = vmatmul.mubr.f32.gmra.mrb[0].mxu0 %v2675
      %v2743 = vpop.f32.mrb[0].mxu0
      %v2744 = vadd.f32 %v2659, %v2743
      %v2745 = vpop.f32.mrb[0].mxu0
      %v2746 = vadd.f32 %v2661, %v2745
      %2747 = vdwg.mxu0
      %2748 = vst [vmem:[#allocation4 + $0x10] sm:$0xff] %v2744
      %2749 = vst [vmem:[#allocation4 + $0x18] sm:$0xff] %v2746
      %v2750 = vadd.f32 %v2744, %v2746
      %2751 = vadd.xlane.f32.xlu0 %v2750
      %v2752 = vpop.xlane.xlu0 %2751
      %v2753 = vadd.f32 %v2572, %v2752
      %v2754 = vmul.f32 %v2744, %v2744
      %v2755 = vmul.f32 %v2746, %v2746
      %v2756 = vadd.f32 %v2754, %v2755
      %2757 = vadd.xlane.f32.xlu0 %v2756
      %v2758 = vpop.xlane.xlu0 %2757
      %v2759 = vadd.f32 %v2578, %v2758
      %s2760 = scalar_lea.vmem %s1, 16
      %v2761 = vld [vmem:[%s2760] sm:$0xff]
      %v2762 = vld [vmem:[#allocation3 + $0x10] sm:$0xf0]
      %v2763 = vld [vmem:[#allocation3 + $0x18] sm:$0xf0]
      %v2764 = vld [vmem:[#allocation3 + $0x20] sm:$0xf]
      %v2765 = vld [vmem:[#allocation3 + $0x28] sm:$0xf]
      %v2766 = vld [vmem:[#allocation3 + $0x30] sm:$0xff]
      %v2767 = vld [vmem:[#allocation3 + $0x38] sm:$0xff]
      %2769 = vrot.lane.b32.xlu0 %v2761, 120
      %v2770 = vpop.permute.xlu0 %2769
      %v2771 = vsel %vm2420, %v2770, 0
      %2773 = vmatprep.subr.mxu0 %v2767
      %2774 = vmatpush1.msra.mxu0 %v2766
      %2775 = vmatprep.subr.mxu0 0.0
      %2776 = vmatpush1.msra.mxu0 0.0
      %2777 = vmatprep.subr.mxu0 0.0
      %2778 = vmatpush1.msra.mxu0 0.0
      %2779 = vmatprep.subr.mxu0 0.0
      %2780 = vmatpush1.msra.mxu0 0.0
      %2781 = vmatprep.subr.mxu0 0.0
      %2782 = vmatpush1.msra.mxu0 0.0
      %2783 = vmatprep.subr.mxu0 0.0
      %2784 = vmatpush1.msra.mxu0 0.0
      %2785 = vmatprep.subr.mxu0 0.0
      %2786 = vmatpush1.msra.mxu0 0.0
      %2787 = vmatprep.subr.mxu0 0.0
      %2788 = vmatpush1.msra.mxu0 0.0
      %2789 = vmatprep.subr.mxu0 0.0
      %2790 = vmatpush1.msra.mxu0 0.0
      %2791 = vmatprep.subr.mxu0 0.0
      %2792 = vmatpush1.msra.mxu0 0.0
      %2793 = vmatprep.subr.mxu0 0.0
      %2794 = vmatpush1.msra.mxu0 0.0
      %2795 = vmatprep.subr.mxu0 0.0
      %2796 = vmatpush1.msra.mxu0 0.0
      %2797 = vmatprep.subr.mxu0 0.0
      %2798 = vmatpush1.msra.mxu0 0.0
      %2799 = vmatprep.subr.mxu0 0.0
      %2800 = vmatpush1.msra.mxu0 0.0
      %2801 = vmatprep.subr.mxu0 0.0
      %2802 = vmatpush1.msra.mxu0 0.0
      %2803 = vmatprep.subr.mxu0 0.0
      %2804 = vmatpush1.msra.mxu0 0.0
      %2805 = vmatprep.subr.mxu0 0.0
      %2806 = vmatpush1.msra.mxu0 0.0
      %2807 = vmatprep.subr.mxu0 0.0
      %2808 = vmatpush1.msra.mxu0 0.0
      %2809 = vmatprep.subr.mxu0 0.0
      %2810 = vmatpush1.msra.mxu0 0.0
      %2811 = vmatprep.subr.mxu0 0.0
      %2812 = vmatpush1.msra.mxu0 0.0
      %2813 = vmatprep.subr.mxu0 0.0
      %2814 = vmatpush1.msra.mxu0 0.0
      %2815 = vmatprep.subr.mxu0 0.0
      %2816 = vmatpush1.msra.mxu0 0.0
      %2817 = vmatprep.subr.mxu0 0.0
      %2818 = vmatpush1.msra.mxu0 0.0
      %2819 = vmatprep.subr.mxu0 0.0
      %2820 = vmatpush1.msra.mxu0 0.0
      %2821 = vmatprep.subr.mxu0 0.0
      %2822 = vmatpush1.msra.mxu0 0.0
      %2823 = vmatprep.subr.mxu0 0.0
      %2824 = vmatpush1.msra.mxu0 0.0
      %2825 = vmatprep.subr.mxu0 0.0
      %2826 = vmatpush1.msra.mxu0 0.0
      %2827 = vmatprep.subr.mxu0 0.0
      %2828 = vmatpush1.msra.mxu0 0.0
      %2829 = vmatprep.subr.mxu0 0.0
      %2830 = vmatpush1.msra.mxu0 0.0
      %2831 = vmatprep.subr.mxu0 0.0
      %2832 = vmatpush1.msra.mxu0 0.0
      %2833 = vmatprep.subr.mxu0 0.0
      %2834 = vmatpush1.msra.mxu0 0.0
      %2835 = vmatprep.subr.mxu0 0.0
      %2836 = vmatpush1.msra.mxu0 0.0
      %2837 = vmatprep.mubr.f32.mxu0 0.0
      %2838 = vmatmul.mubr.f32.gmra.mrb[0].mxu0 %v2771
      %v2839 = vpop.f32.mrb[0].mxu0
      %v2840 = vadd.f32 0.0, %v2839
      %v2841 = vpop.f32.mrb[0].mxu0
      %v2842 = vadd.f32 0.0, %v2841
      %2843 = vdwg.mxu0
      %v2848 = vrot.slane %v2762, 4
      %v2849 = vrot.slane %v2764, 4
      %v2850 = vsel %vm2411, %v2848, %v2849
      %v2851 = vrot.slane %v2763, 4
      %v2852 = vrot.slane %v2765, 4
      %v2853 = vsel %vm2411, %v2851, %v2852
      %v2856 = vsel %vm2420, %v2761, 0
      %2858 = vmatprep.subr.mxu0 %v2853
      %2859 = vmatpush1.msra.mxu0 %v2850
      %2860 = vmatprep.subr.mxu0 0.0
      %2861 = vmatpush1.msra.mxu0 0.0
      %2862 = vmatprep.subr.mxu0 0.0
      %2863 = vmatpush1.msra.mxu0 0.0
      %2864 = vmatprep.subr.mxu0 0.0
      %2865 = vmatpush1.msra.mxu0 0.0
      %2866 = vmatprep.subr.mxu0 0.0
      %2867 = vmatpush1.msra.mxu0 0.0
      %2868 = vmatprep.subr.mxu0 0.0
      %2869 = vmatpush1.msra.mxu0 0.0
      %2870 = vmatprep.subr.mxu0 0.0
      %2871 = vmatpush1.msra.mxu0 0.0
      %2872 = vmatprep.subr.mxu0 0.0
      %2873 = vmatpush1.msra.mxu0 0.0
      %2874 = vmatprep.subr.mxu0 0.0
      %2875 = vmatpush1.msra.mxu0 0.0
      %2876 = vmatprep.subr.mxu0 0.0
      %2877 = vmatpush1.msra.mxu0 0.0
      %2878 = vmatprep.subr.mxu0 0.0
      %2879 = vmatpush1.msra.mxu0 0.0
      %2880 = vmatprep.subr.mxu0 0.0
      %2881 = vmatpush1.msra.mxu0 0.0
      %2882 = vmatprep.subr.mxu0 0.0
      %2883 = vmatpush1.msra.mxu0 0.0
      %2884 = vmatprep.subr.mxu0 0.0
      %2885 = vmatpush1.msra.mxu0 0.0
      %2886 = vmatprep.subr.mxu0 0.0
      %2887 = vmatpush1.msra.mxu0 0.0
      %2888 = vmatprep.subr.mxu0 0.0
      %2889 = vmatpush1.msra.mxu0 0.0
      %2890 = vmatprep.subr.mxu0 0.0
      %2891 = vmatpush1.msra.mxu0 0.0
      %2892 = vmatprep.subr.mxu0 0.0
      %2893 = vmatpush1.msra.mxu0 0.0
      %2894 = vmatprep.subr.mxu0 0.0
      %2895 = vmatpush1.msra.mxu0 0.0
      %2896 = vmatprep.subr.mxu0 0.0
      %2897 = vmatpush1.msra.mxu0 0.0
      %2898 = vmatprep.subr.mxu0 0.0
      %2899 = vmatpush1.msra.mxu0 0.0
      %2900 = vmatprep.subr.mxu0 0.0
      %2901 = vmatpush1.msra.mxu0 0.0
      %2902 = vmatprep.subr.mxu0 0.0
      %2903 = vmatpush1.msra.mxu0 0.0
      %2904 = vmatprep.subr.mxu0 0.0
      %2905 = vmatpush1.msra.mxu0 0.0
      %2906 = vmatprep.subr.mxu0 0.0
      %2907 = vmatpush1.msra.mxu0 0.0
      %2908 = vmatprep.subr.mxu0 0.0
      %2909 = vmatpush1.msra.mxu0 0.0
      %2910 = vmatprep.subr.mxu0 0.0
      %2911 = vmatpush1.msra.mxu0 0.0
      %2912 = vmatprep.subr.mxu0 0.0
      %2913 = vmatpush1.msra.mxu0 0.0
      %2914 = vmatprep.subr.mxu0 0.0
      %2915 = vmatpush1.msra.mxu0 0.0
      %2916 = vmatprep.subr.mxu0 0.0
      %2917 = vmatpush1.msra.mxu0 0.0
      %2918 = vmatprep.subr.mxu0 0.0
      %2919 = vmatpush1.msra.mxu0 0.0
      %2920 = vmatprep.subr.mxu0 0.0
      %2921 = vmatpush1.msra.mxu0 0.0
      %2922 = vmatprep.mubr.f32.mxu0 0.0
      %2923 = vmatmul.mubr.f32.gmra.mrb[0].mxu0 %v2856
      %v2924 = vpop.f32.mrb[0].mxu0
      %v2925 = vadd.f32 %v2840, %v2924
      %v2926 = vpop.f32.mrb[0].mxu0
      %v2927 = vadd.f32 %v2842, %v2926
      %2928 = vdwg.mxu0
      %2929 = vst [vmem:[#allocation4 + $0x20] sm:$0xff] %v2925
      %2930 = vst [vmem:[#allocation4 + $0x28] sm:$0xff] %v2927
      %v2931 = vadd.f32 %v2925, %v2927
      %2932 = vadd.xlane.f32.xlu0 %v2931
      %v2933 = vpop.xlane.xlu0 %2932
      %v2934 = vadd.f32 %v2753, %v2933
      %v2935 = vmul.f32 %v2925, %v2925
      %v2936 = vmul.f32 %v2927, %v2927
      %v2937 = vadd.f32 %v2935, %v2936
      %2938 = vadd.xlane.f32.xlu0 %v2937
      %v2939 = vpop.xlane.xlu0 %2938
      %v2940 = vadd.f32 %v2759, %v2939
      %s2941 = scalar_lea.vmem %s1, 24
      %v2942 = vld [vmem:[%s2941] sm:$0xff]
      %v2943 = vld [vmem:[#allocation3 + $0x20] sm:$0xff]
      %v2944 = vld [vmem:[#allocation3 + $0x28] sm:$0xff]
      %v2945 = vld [vmem:[#allocation3 + $0x30] sm:$0xf0]
      %v2946 = vld [vmem:[#allocation3 + $0x38] sm:$0xf0]
      %v2947 = vld [vmem:[#allocation3 + $0x40] sm:$0xf]
      %v2948 = vld [vmem:[#allocation3 + $0x48] sm:$0xf]
      %2950 = vrot.lane.b32.xlu0 %v2942, 120
      %v2951 = vpop.permute.xlu0 %2950
      %v2956 = vrot.slane %v2945, 4
      %v2957 = vrot.slane %v2947, 4
      %v2958 = vsel %vm2411, %v2956, %v2957
      %v2959 = vrot.slane %v2946, 4
      %v2960 = vrot.slane %v2948, 4
      %v2961 = vsel %vm2411, %v2959, %v2960
      %v2964 = vsel %vm2420, %v2951, 0
      %2966 = vmatprep.subr.mxu0 %v2961
      %2967 = vmatpush1.msra.mxu0 %v2958
      %2968 = vmatprep.subr.mxu0 0.0
      %2969 = vmatpush1.msra.mxu0 0.0
      %2970 = vmatprep.subr.mxu0 0.0
      %2971 = vmatpush1.msra.mxu0 0.0
      %2972 = vmatprep.subr.mxu0 0.0
      %2973 = vmatpush1.msra.mxu0 0.0
      %2974 = vmatprep.subr.mxu0 0.0
      %2975 = vmatpush1.msra.mxu0 0.0
      %2976 = vmatprep.subr.mxu0 0.0
      %2977 = vmatpush1.msra.mxu0 0.0
      %2978 = vmatprep.subr.mxu0 0.0
      %2979 = vmatpush1.msra.mxu0 0.0
      %2980 = vmatprep.subr.mxu0 0.0
      %2981 = vmatpush1.msra.mxu0 0.0
      %2982 = vmatprep.subr.mxu0 0.0
      %2983 = vmatpush1.msra.mxu0 0.0
      %2984 = vmatprep.subr.mxu0 0.0
      %2985 = vmatpush1.msra.mxu0 0.0
      %2986 = vmatprep.subr.mxu0 0.0
      %2987 = vmatpush1.msra.mxu0 0.0
      %2988 = vmatprep.subr.mxu0 0.0
      %2989 = vmatpush1.msra.mxu0 0.0
      %2990 = vmatprep.subr.mxu0 0.0
      %2991 = vmatpush1.msra.mxu0 0.0
      %2992 = vmatprep.subr.mxu0 0.0
      %2993 = vmatpush1.msra.mxu0 0.0
      %2994 = vmatprep.subr.mxu0 0.0
      %2995 = vmatpush1.msra.mxu0 0.0
      %2996 = vmatprep.subr.mxu0 0.0
      %2997 = vmatpush1.msra.mxu0 0.0
      %2998 = vmatprep.subr.mxu0 0.0
      %2999 = vmatpush1.msra.mxu0 0.0
      %3000 = vmatprep.subr.mxu0 0.0
      %3001 = vmatpush1.msra.mxu0 0.0
      %3002 = vmatprep.subr.mxu0 0.0
      %3003 = vmatpush1.msra.mxu0 0.0
      %3004 = vmatprep.subr.mxu0 0.0
      %3005 = vmatpush1.msra.mxu0 0.0
      %3006 = vmatprep.subr.mxu0 0.0
      %3007 = vmatpush1.msra.mxu0 0.0
      %3008 = vmatprep.subr.mxu0 0.0
      %3009 = vmatpush1.msra.mxu0 0.0
      %3010 = vmatprep.subr.mxu0 0.0
      %3011 = vmatpush1.msra.mxu0 0.0
      %3012 = vmatprep.subr.mxu0 0.0
      %3013 = vmatpush1.msra.mxu0 0.0
      %3014 = vmatprep.subr.mxu0 0.0
      %3015 = vmatpush1.msra.mxu0 0.0
      %3016 = vmatprep.subr.mxu0 0.0
      %3017 = vmatpush1.msra.mxu0 0.0
      %3018 = vmatprep.subr.mxu0 0.0
      %3019 = vmatpush1.msra.mxu0 0.0
      %3020 = vmatprep.subr.mxu0 0.0
      %3021 = vmatpush1.msra.mxu0 0.0
      %3022 = vmatprep.subr.mxu0 0.0
      %3023 = vmatpush1.msra.mxu0 0.0
      %3024 = vmatprep.subr.mxu0 0.0
      %3025 = vmatpush1.msra.mxu0 0.0
      %3026 = vmatprep.subr.mxu0 0.0
      %3027 = vmatpush1.msra.mxu0 0.0
      %3028 = vmatprep.subr.mxu0 0.0
      %3029 = vmatpush1.msra.mxu0 0.0
      %3030 = vmatprep.mubr.f32.mxu0 0.0
      %3031 = vmatmul.mubr.f32.gmra.mrb[0].mxu0 %v2964
      %v3032 = vpop.f32.mrb[0].mxu0
      %v3033 = vadd.f32 0.0, %v3032
      %v3034 = vpop.f32.mrb[0].mxu0
      %v3035 = vadd.f32 0.0, %v3034
      %3036 = vdwg.mxu0
      %v3037 = vsel %vm2420, %v2942, 0
      %3039 = vmatprep.subr.mxu0 %v2944
      %3040 = vmatpush1.msra.mxu0 %v2943
      %3041 = vmatprep.subr.mxu0 0.0
      %3042 = vmatpush1.msra.mxu0 0.0
      %3043 = vmatprep.subr.mxu0 0.0
      %3044 = vmatpush1.msra.mxu0 0.0
      %3045 = vmatprep.subr.mxu0 0.0
      %3046 = vmatpush1.msra.mxu0 0.0
      %3047 = vmatprep.subr.mxu0 0.0
      %3048 = vmatpush1.msra.mxu0 0.0
      %3049 = vmatprep.subr.mxu0 0.0
      %3050 = vmatpush1.msra.mxu0 0.0
      %3051 = vmatprep.subr.mxu0 0.0
      %3052 = vmatpush1.msra.mxu0 0.0
      %3053 = vmatprep.subr.mxu0 0.0
      %3054 = vmatpush1.msra.mxu0 0.0
      %3055 = vmatprep.subr.mxu0 0.0
      %3056 = vmatpush1.msra.mxu0 0.0
      %3057 = vmatprep.subr.mxu0 0.0
      %3058 = vmatpush1.msra.mxu0 0.0
      %3059 = vmatprep.subr.mxu0 0.0
      %3060 = vmatpush1.msra.mxu0 0.0
      %3061 = vmatprep.subr.mxu0 0.0
      %3062 = vmatpush1.msra.mxu0 0.0
      %3063 = vmatprep.subr.mxu0 0.0
      %3064 = vmatpush1.msra.mxu0 0.0
      %3065 = vmatprep.subr.mxu0 0.0
      %3066 = vmatpush1.msra.mxu0 0.0
      %3067 = vmatprep.subr.mxu0 0.0
      %3068 = vmatpush1.msra.mxu0 0.0
      %3069 = vmatprep.subr.mxu0 0.0
      %3070 = vmatpush1.msra.mxu0 0.0
      %3071 = vmatprep.subr.mxu0 0.0
      %3072 = vmatpush1.msra.mxu0 0.0
      %3073 = vmatprep.subr.mxu0 0.0
      %3074 = vmatpush1.msra.mxu0 0.0
      %3075 = vmatprep.subr.mxu0 0.0
      %3076 = vmatpush1.msra.mxu0 0.0
      %3077 = vmatprep.subr.mxu0 0.0
      %3078 = vmatpush1.msra.mxu0 0.0
      %3079 = vmatprep.subr.mxu0 0.0
      %3080 = vmatpush1.msra.mxu0 0.0
      %3081 = vmatprep.subr.mxu0 0.0
      %3082 = vmatpush1.msra.mxu0 0.0
      %3083 = vmatprep.subr.mxu0 0.0
      %3084 = vmatpush1.msra.mxu0 0.0
      %3085 = vmatprep.subr.mxu0 0.0
      %3086 = vmatpush1.msra.mxu0 0.0
      %3087 = vmatprep.subr.mxu0 0.0
      %3088 = vmatpush1.msra.mxu0 0.0
      %3089 = vmatprep.subr.mxu0 0.0
      %3090 = vmatpush1.msra.mxu0 0.0
      %3091 = vmatprep.subr.mxu0 0.0
      %3092 = vmatpush1.msra.mxu0 0.0
      %3093 = vmatprep.subr.mxu0 0.0
      %3094 = vmatpush1.msra.mxu0 0.0
      %3095 = vmatprep.subr.mxu0 0.0
      %3096 = vmatpush1.msra.mxu0 0.0
      %3097 = vmatprep.subr.mxu0 0.0
      %3098 = vmatpush1.msra.mxu0 0.0
      %3099 = vmatprep.subr.mxu0 0.0
      %3100 = vmatpush1.msra.mxu0 0.0
      %3101 = vmatprep.subr.mxu0 0.0
      %3102 = vmatpush1.msra.mxu0 0.0
      %3103 = vmatprep.mubr.f32.mxu0 0.0
      %3104 = vmatmul.mubr.f32.gmra.mrb[0].mxu0 %v3037
      %v3105 = vpop.f32.mrb[0].mxu0
      %v3106 = vadd.f32 %v3033, %v3105
      %v3107 = vpop.f32.mrb[0].mxu0
      %v3108 = vadd.f32 %v3035, %v3107
      %3109 = vdwg.mxu0
      %3110 = vst [vmem:[#allocation4 + $0x30] sm:$0xff] %v3106
      %3111 = vst [vmem:[#allocation4 + $0x38] sm:$0xff] %v3108
      %v3112 = vadd.f32 %v3106, %v3108
      %3113 = vadd.xlane.f32.xlu0 %v3112
      %v3114 = vpop.xlane.xlu0 %3113
      %v3115 = vadd.f32 %v2934, %v3114
      %v3116 = vmul.f32 %v3106, %v3106
      %v3117 = vmul.f32 %v3108, %v3108
      %v3118 = vadd.f32 %v3116, %v3117
      %3119 = vadd.xlane.f32.xlu0 %v3118
      %v3120 = vpop.xlane.xlu0 %3119
      %v3121 = vadd.f32 %v2940, %v3120
      %v3122 = vmul.f32 %v3115, 0.0009765625
      %v3123 = vmul.f32 %v3121, 0.0009765625
      %v3124 = vmul.f32 %v3122, %v3122
      %v3125 = vsub.f32 %v3123, %v3124
      %v3126 = vmax.f32 %v3125, 0.0
      %v3127 = vadd.f32 %v3126, 1e-05
      %v3128 = vrsqrt.pop %v3127
      %v3129 = vld [vmem:[#allocation4] sm:$0xff]
      %v3130 = vld [vmem:[#allocation4 + $0x8] sm:$0xff]
      %v3131 = vld [vmem:[#allocation4 + $0x10] sm:$0xff]
      %v3132 = vld [vmem:[#allocation4 + $0x18] sm:$0xff]
      %v3133 = vld [vmem:[#allocation4 + $0x20] sm:$0xff]
      %v3134 = vld [vmem:[#allocation4 + $0x28] sm:$0xff]
      %v3135 = vld [vmem:[#allocation4 + $0x30] sm:$0xff]
      %v3136 = vld [vmem:[#allocation4 + $0x38] sm:$0xff]
      %v3137 = vsub.f32 %v3129, %v3122
      %v3138 = vsub.f32 %v3130, %v3122
      %v3139 = vsub.f32 %v3131, %v3122
      %v3140 = vsub.f32 %v3132, %v3122
      %v3141 = vsub.f32 %v3133, %v3122
      %v3142 = vsub.f32 %v3134, %v3122
      %v3143 = vsub.f32 %v3135, %v3122
      %v3144 = vsub.f32 %v3136, %v3122
      %v3145 = vmul.f32 %v3137, %v3128
      %v3146 = vmul.f32 %v3138, %v3128
      %v3147 = vmul.f32 %v3139, %v3128
      %v3148 = vmul.f32 %v3140, %v3128
      %v3149 = vmul.f32 %v3141, %v3128
      %v3150 = vmul.f32 %v3142, %v3128
      %v3151 = vmul.f32 %v3143, %v3128
      %v3152 = vmul.f32 %v3144, %v3128
      %v3153 = vmax.f32 %v3145, 0.0
      %v3154 = vmax.f32 %v3146, 0.0
      %v3155 = vmax.f32 %v3147, 0.0
      %v3156 = vmax.f32 %v3148, 0.0
      %v3157 = vmax.f32 %v3149, 0.0
      %v3158 = vmax.f32 %v3150, 0.0
      %v3159 = vmax.f32 %v3151, 0.0
      %v3160 = vmax.f32 %v3152, 0.0
      %3161 = vst [vmem:[%s143] sm:$0xff] %v3153
      %3162 = vst [vmem:[%s143 + $0x8] sm:$0xff] %v3154
      %3163 = vst [vmem:[%s143 + $0x10] sm:$0xff] %v3155
      %3164 = vst [vmem:[%s143 + $0x18] sm:$0xff] %v3156
      %3165 = vst [vmem:[%s143 + $0x20] sm:$0xff] %v3157
      %3166 = vst [vmem:[%s143 + $0x28] sm:$0xff] %v3158
      %3167 = vst [vmem:[%s143 + $0x30] sm:$0xff] %v3159
      %3168 = vst [vmem:[%s143 + $0x38] sm:$0xff] %v3160
      %p3169 = scmp.lt.s32.totalorder %s13, 1
      %s3170 = scalar_select %p3169, %s13, 1
      %s3171 = smul.addr %s3170, 8
      %s3172 = smul.addr %s3171, 8
      %s3173 = scalar_lea.vmem %s2, %s3172
      // Predicated region
      $region29: #{unet_up_forward.1} parent=27 // pred_check
        %p3174 = pneg %p78
      $region30: #{unet_up_forward.1} parent=27 // pred_check_branch
        %3176 = sbr.rel (%p3174) target = $region32
      $region31: #{unet_up_forward.1} parent=27 // pred_region
        _
      $region32: #{unet_up_forward.1} parent=27 // pred_fallthru
        _
    $region28: #{unet_up_forward.1} parent=5 // pred_fallthru
      _
    %p3177 = scmp.le.s32.totalorder 2, %s8
    // Predicated region
    $region33: #{unet_up_forward.1} parent=5 // pred_check
      %p3178 = pneg %p3177
    $region34: #{unet_up_forward.1} parent=5 // pred_check_branch
      %3180 = sbr.rel (%p3178) target = $region36
    $region35: #{unet_up_forward.1} parent=5 // pred_region
      %s3181 = ssub.s32 %s8, 2
      // Predicated region
      $region37: #{unet_up_forward.1} parent=35 // pred_check
        %p3182 = pneg %p84
      $region38: #{unet_up_forward.1} parent=35 // pred_check_branch
        %3184 = sbr.rel (%p3182) target = $region40
      $region39: #{unet_up_forward.1} parent=35 // pred_region
        %p3185 = scmp.lt.s32.totalorder %s14, 1
        %s3186 = scalar_select %p3185, %s14, 1
        %s3187 = smul.addr %s3186, 8
        %s3188 = smul.addr %s3187, 8
        %s3189 = scalar_lea.vmem %s2, %s3188
      $region40: #{unet_up_forward.1} parent=35 // pred_fallthru
        _
    $region36: #{unet_up_forward.1} parent=5 // pred_fallthru
      _
  $region6: #{unet_up_forward.1} parent=0 // loop_footer
    %s12 = sadd.s32 1, %s8
  $region7: #{unet_up_forward.1} parent=0 // loop_footer_branch
    %7 = sbr.rel target = $region3
  $region8: #{unet_up_forward.1} parent=0 // loop_exit
    _

</llo_original>
